<compile_context>
chip_gen: v6e
topology: v6e:2x2x1
jax: 0.10.0
libtpu: 0.0.40
codegen_flags: <defaults>
</compile_context>

<pallas_src>
import functools

import jax
import jax.numpy as jnp
from jax.experimental import pallas as pl
from jax.experimental.pallas import tpu as pltpu


# ----------------------------- Pallas kernel --------------------------------
def _point_fc_kernel(x_ref, w1_ref, b1_ref,
                     w2_ref, b2_ref,
                     w3_ref, b3_ref, out_ref, *, compute_dtype):
    """One tile of points: [Linear(BN-folded) + bias + ReLU] x2 -> Linear + bias.

    Weights are bf16 and resident in VMEM; accumulation is f32 on the MXU.
    The final weight/bias are zero-padded to a 128-lane output so the store is
    a full, unmasked lane-dense block.
    """
    x = x_ref[...].astype(compute_dtype)                              # cast on VPU, free

    h = jnp.dot(x, w1_ref[...], preferred_element_type=jnp.float32)  # (TN, H1) f32 acc
    h = jnp.maximum(h + b1_ref[...], 0.0).astype(compute_dtype)      # folded BN bias+ReLU

    h = jnp.dot(h, w2_ref[...], preferred_element_type=jnp.float32)  # (TN, H2)
    h = jnp.maximum(h + b2_ref[...], 0.0).astype(compute_dtype)

    o = jnp.dot(h, w3_ref[...], preferred_element_type=jnp.float32)  # (TN, 128-padded)
    out_ref[...] = (o + b3_ref[...]).astype(out_ref.dtype)


# --------------------------- tile-size selection ------------------------------
def _choose_tile_n(n_points, tile_n):
    """Sublane-aligned point tile; prefer an even number of grid steps so the
    'parallel' grid splits evenly over v7x's two TensorCores."""
    cdiv = lambda a, b: -(-a // b)
    tile_n = int(min(max(tile_n, 8), 2048))               # cap keeps v5e well under
    tile_n = 8 * cdiv(tile_n, 8)                          # its 16 MiB scoped-VMEM default
    tile_n = min(tile_n, 8 * cdiv(n_points, 8))           # never bigger than the data
    n_tiles = cdiv(n_points, tile_n)
    if n_tiles % 2 == 1 and n_points > 8:
        n_even = n_tiles + 1
        cand = max(8, 8 * cdiv(cdiv(n_points, n_even), 8))
        if cdiv(n_points, cand) % 2 == 0:
            tile_n, n_tiles = cand, cdiv(n_points, cand)
    return tile_n, n_tiles


# ------------------------------- wrapper -------------------------------------
def point_head_fc_forward(x, params, *, tile_n=1024,
                          compute_dtype=jnp.bfloat16, out_dtype=jnp.float32):
    """Run the make_fc_layers MLP over (N, C_in) point features.

    To amortize launch + weight-load cost, callers should stack multiple point
    clouds / frames along the row axis and pass (B*N, C_in) here.

    params: dict with
      w1 (C_in,H1), b1 (1,H1), w2 (H1,H2), b2 (1,H2), w3 (H2,C_out), b3 (1,C_out)
    where w1/w2 already carry the folded eval-mode BatchNorm scale and weights
    are stored transposed relative to torch.nn.Linear (kernel does x @ W).
    """
    N, C_in = x.shape
    H1 = params["w1"].shape[1]
    H2 = params["w2"].shape[1]
    C_out = params["w3"].shape[1]
    C_pad = 128 * pl.cdiv(C_out, 128)                     # lane-dense output width

    # bf16 matmul operands, f32 biases / epilogue.  w3/b3 zero-padded to C_pad.
    w1 = params["w1"].astype(compute_dtype)
    w2 = params["w2"].astype(compute_dtype)
    b1 = params["b1"].astype(jnp.float32)
    b2 = params["b2"].astype(jnp.float32)
    w3 = jnp.zeros((H2, C_pad), compute_dtype).at[:, :C_out].set(
        params["w3"].astype(compute_dtype))
    b3 = jnp.zeros((1, C_pad), jnp.float32).at[:, :C_out].set(
        params["b3"].astype(jnp.float32))

    tile_n, n_tiles = _choose_tile_n(N, tile_n)

    def resident(shape):
        # Constant index_map -> block is grid-invariant (weights stay in VMEM).
        return pl.BlockSpec(shape, lambda i: (0, 0))

    flops = 2 * N * (C_in * H1 + H1 * H2 + H2 * C_pad)
    bytes_accessed = (
        N * C_in * x.dtype.itemsize                                   # x (f32 in HBM)
        + (C_in * H1 + H1 * H2 + H2 * C_pad) * jnp.dtype(compute_dtype).itemsize
        + (H1 + H2 + C_pad) * 4                                       # biases
        + N * C_pad * jnp.dtype(out_dtype).itemsize                   # output
    )

    kernel = functools.partial(_point_fc_kernel, compute_dtype=compute_dtype)

    out = pl.pallas_call(
        kernel,
        out_shape=jax.ShapeDtypeStruct((N, C_pad), out_dtype),
        grid_spec=pl.GridSpec(
            grid=(n_tiles,),
            in_specs=[
                pl.BlockSpec((tile_n, C_in), lambda i: (i, 0)),       # x tile (ragged edge ok)
                resident((C_in, H1)), resident((1, H1)),              # layer 1 (BN folded)
                resident((H1, H2)),  resident((1, H2)),               # layer 2 (BN folded)
                resident((H2, C_pad)), resident((1, C_pad)),          # final linear (padded)
            ],
            out_specs=pl.BlockSpec((tile_n, C_pad), lambda i: (i, 0)),
        ),
        compiler_params=pltpu.CompilerParams(
            dimension_semantics=("parallel",),
        ),
        cost_estimate=pl.CostEstimate(
            flops=flops, transcendentals=0, bytes_accessed=bytes_accessed),
    )(x, w1, b1, w2, b2, w3, b3)

    return out[:N, :C_out]


# ------------------------- deterministic parameters --------------------------
def make_fc_layer_params(key, input_channels, fc_cfg, output_channels, eps=1e-5):
    """Synthetic params mirroring make_fc_layers, with eval-mode BN folded into
    the Linear weights (per-column scale) and a per-channel bias."""
    keys = jax.random.split(key, 2 * len(fc_cfg) + 2)
    params = {}
    c_in = input_channels
    for k, c_out in enumerate(fc_cfg):
        w = jax.random.normal(keys[2 * k], (c_in, c_out), jnp.float32) * 0.05
        # BatchNorm1d(c_out) eval-mode fold with deterministic stats
        gamma = 1.0 + 0.01 * jnp.arange(c_out, dtype=jnp.float32)
        beta = 0.02 * jnp.arange(c_out, dtype=jnp.float32) - 0.1
        run_mean = 0.001 * jnp.arange(c_out, dtype=jnp.float32)
        run_var = 1.0 + 0.005 * jnp.arange(c_out, dtype=jnp.float32)
        scale = gamma / jnp.sqrt(run_var + eps)
        bias = beta - run_mean * scale
        params[f"w{k + 1}"] = w * scale[None, :]          # fold BN scale into weight
        params[f"b{k + 1}"] = bias.reshape(1, c_out)
        c_in = c_out
    wf = jax.random.normal(keys[-2], (c_in, output_channels), jnp.float32) * 0.05
    bf = jax.random.normal(keys[-1], (1, output_channels), jnp.float32) * 0.05
    params[f"w{len(fc_cfg) + 1}"] = wf
    params[f"b{len(fc_cfg) + 1}"] = bf
    return params


def reference_forward(x, p, compute_dtype=jnp.bfloat16):
    """Pure-JAX reference matching the kernel's bf16-operand / f32-accum math."""
    def mm(a, w):
        return jnp.dot(a.astype(compute_dtype), w.astype(compute_dtype),
                       preferred_element_type=jnp.float32)
    h = jnp.maximum(mm(x, p["w1"]) + p["b1"], 0.0)
    h = jnp.maximum(mm(h, p["w2"]) + p["b2"], 0.0)
    return mm(h, p["w3"]) + p["b3"]


# ----------------------------------- main ------------------------------------
if __name__ == "__main__":
    key = jax.random.PRNGKey(0)
    k_x, k_p = jax.random.split(key)

    # Shapes consistent with a point head: N points, 32-dim point features,
    # fc_cfg=[128, 128], num_class=3.  The tile chooser turns N=1024 into two
    # 512-row "parallel" grid steps (both v7x TensorCores get work).
    N, C_IN = 1024, 32
    FC_CFG = [128, 128]
    NUM_CLASS = 3

    point_features = jax.random.normal(k_x, (N, C_IN), jnp.float32)
    params = make_fc_layer_params(k_p, C_IN, FC_CFG, NUM_CLASS)

    point_cls_preds = point_head_fc_forward(point_features, params, tile_n=1024)
    point_cls_preds = jax.block_until_ready(point_cls_preds)

    ref = reference_forward(point_features, params)
    assert point_cls_preds.shape == (N, NUM_CLASS)
    assert jnp.allclose(point_cls_preds, ref, atol=1e-2, rtol=1e-2), (
        "Pallas output mismatch vs reference")

    print("KERNEL_OK")
</pallas_src>

<mosaic_0001>
module attributes {stable_mosaic.version = 11 : i64} {
  func.func @_point_fc_kernel(%arg0: i32, %arg1: memref<512x32xf32, #tpu.memory_space<vmem>>, %arg2: memref<32x128xbf16, #tpu.memory_space<vmem>>, %arg3: memref<1x128xf32, #tpu.memory_space<vmem>>, %arg4: memref<128x128xbf16, #tpu.memory_space<vmem>>, %arg5: memref<1x128xf32, #tpu.memory_space<vmem>>, %arg6: memref<128x128xbf16, #tpu.memory_space<vmem>>, %arg7: memref<1x128xf32, #tpu.memory_space<vmem>>, %arg8: memref<512x128xf32, #tpu.memory_space<vmem>>) attributes {dimension_semantics = [#tpu.dimension_semantics<parallel>], iteration_bounds = array<i64: 2>, scalar_prefetch = 0 : i64, scratch_operands = 0 : i64, tpu.core_type = #tpu.core_type<tc>, window_params = [{transform_indices = @transform_0, window_bounds = array<i64: 512, 32>}, {pipeline_mode = #tpu.pipeline_mode<synchronous>, transform_indices = @transform_1, window_bounds = array<i64: 32, 128>}, {pipeline_mode = #tpu.pipeline_mode<synchronous>, transform_indices = @transform_2, window_bounds = array<i64: 1, 128>}, {pipeline_mode = #tpu.pipeline_mode<synchronous>, transform_indices = @transform_3, window_bounds = array<i64: 128, 128>}, {pipeline_mode = #tpu.pipeline_mode<synchronous>, transform_indices = @transform_4, window_bounds = array<i64: 1, 128>}, {pipeline_mode = #tpu.pipeline_mode<synchronous>, transform_indices = @transform_5, window_bounds = array<i64: 128, 128>}, {pipeline_mode = #tpu.pipeline_mode<synchronous>, transform_indices = @transform_6, window_bounds = array<i64: 1, 128>}, {transform_indices = @transform_7, window_bounds = array<i64: 512, 128>}]} {
    %c0 = arith.constant 0 : index
    %c0_0 = arith.constant 0 : index
    %0 = vector.load %arg1[%c0, %c0_0] : memref<512x32xf32, #tpu.memory_space<vmem>>, vector<512x32xf32>
    %1 = arith.truncf %0 : vector<512x32xf32> to vector<512x32xbf16>
    %c0_1 = arith.constant 0 : index
    %c0_2 = arith.constant 0 : index
    %2 = vector.load %arg2[%c0_1, %c0_2] : memref<32x128xbf16, #tpu.memory_space<vmem>>, vector<32x128xbf16>
    %cst = arith.constant dense<0.000000e+00> : vector<512x128xf32>
    %3 = tpu.matmul %1, %2, %cst {dimension_numbers = #tpu.dot_dimension_numbers<[1], [0], [0], [1], [0, 0, 1, 1], [], []>} : vector<512x32xbf16>, vector<32x128xbf16>, vector<512x128xf32> -> vector<512x128xf32>
    %c0_3 = arith.constant 0 : index
    %c0_4 = arith.constant 0 : index
    %4 = vector.load %arg3[%c0_3, %c0_4] : memref<1x128xf32, #tpu.memory_space<vmem>>, vector<1x128xf32>
    %5 = vector.broadcast %4 : vector<1x128xf32> to vector<512x128xf32>
    %6 = arith.addf %3, %5 : vector<512x128xf32>
    %cst_5 = arith.constant 0.000000e+00 : f32
    %7 = vector.broadcast %cst_5 : f32 to vector<512x128xf32>
    %8 = arith.maximumf %6, %7 : vector<512x128xf32>
    %9 = arith.truncf %8 : vector<512x128xf32> to vector<512x128xbf16>
    %c0_6 = arith.constant 0 : index
    %c0_7 = arith.constant 0 : index
    %10 = vector.load %arg4[%c0_6, %c0_7] : memref<128x128xbf16, #tpu.memory_space<vmem>>, vector<128x128xbf16>
    %cst_8 = arith.constant dense<0.000000e+00> : vector<512x128xf32>
    %11 = tpu.matmul %9, %10, %cst_8 {dimension_numbers = #tpu.dot_dimension_numbers<[1], [0], [0], [1], [0, 0, 1, 1], [], []>} : vector<512x128xbf16>, vector<128x128xbf16>, vector<512x128xf32> -> vector<512x128xf32>
    %c0_9 = arith.constant 0 : index
    %c0_10 = arith.constant 0 : index
    %12 = vector.load %arg5[%c0_9, %c0_10] : memref<1x128xf32, #tpu.memory_space<vmem>>, vector<1x128xf32>
    %13 = vector.broadcast %12 : vector<1x128xf32> to vector<512x128xf32>
    %14 = arith.addf %11, %13 : vector<512x128xf32>
    %cst_11 = arith.constant 0.000000e+00 : f32
    %15 = vector.broadcast %cst_11 : f32 to vector<512x128xf32>
    %16 = arith.maximumf %14, %15 : vector<512x128xf32>
    %17 = arith.truncf %16 : vector<512x128xf32> to vector<512x128xbf16>
    %c0_12 = arith.constant 0 : index
    %c0_13 = arith.constant 0 : index
    %18 = vector.load %arg6[%c0_12, %c0_13] : memref<128x128xbf16, #tpu.memory_space<vmem>>, vector<128x128xbf16>
    %cst_14 = arith.constant dense<0.000000e+00> : vector<512x128xf32>
    %19 = tpu.matmul %17, %18, %cst_14 {dimension_numbers = #tpu.dot_dimension_numbers<[1], [0], [0], [1], [0, 0, 1, 1], [], []>} : vector<512x128xbf16>, vector<128x128xbf16>, vector<512x128xf32> -> vector<512x128xf32>
    %c0_15 = arith.constant 0 : index
    %c0_16 = arith.constant 0 : index
    %20 = vector.load %arg7[%c0_15, %c0_16] : memref<1x128xf32, #tpu.memory_space<vmem>>, vector<1x128xf32>
    %21 = vector.broadcast %20 : vector<1x128xf32> to vector<512x128xf32>
    %22 = arith.addf %19, %21 : vector<512x128xf32>
    %c0_17 = arith.constant 0 : index
    %c0_18 = arith.constant 0 : index
    %23 = vector.load %arg8[%c0_17, %c0_18] : memref<512x128xf32, #tpu.memory_space<vmem>>, vector<512x128xf32>
    tpu.vector_store %arg8[%c0_17, %c0_18], %22 {strides = array<i32>} : memref<512x128xf32, #tpu.memory_space<vmem>>, vector<512x128xf32>,
    return
  }
  func.func @transform_0(%arg0: i32) -> (i32, i32) {
    %c0_i32 = arith.constant 0 : i32
    %c0_i32_0 = arith.constant 0 : i32
    return %arg0, %c0_i32 : i32, i32
  }
  func.func @transform_1(%arg0: i32) -> (i32, i32) {
    %c0_i32 = arith.constant 0 : i32
    %c0_i32_0 = arith.constant 0 : i32
    %c0_i32_1 = arith.constant 0 : i32
    return %c0_i32, %c0_i32_0 : i32, i32
  }
  func.func @transform_2(%arg0: i32) -> (i32, i32) {
    %c0_i32 = arith.constant 0 : i32
    %c0_i32_0 = arith.constant 0 : i32
    %c0_i32_1 = arith.constant 0 : i32
    return %c0_i32, %c0_i32_0 : i32, i32
  }
  func.func @transform_3(%arg0: i32) -> (i32, i32) {
    %c0_i32 = arith.constant 0 : i32
    %c0_i32_0 = arith.constant 0 : i32
    %c0_i32_1 = arith.constant 0 : i32
    return %c0_i32, %c0_i32_0 : i32, i32
  }
  func.func @transform_4(%arg0: i32) -> (i32, i32) {
    %c0_i32 = arith.constant 0 : i32
    %c0_i32_0 = arith.constant 0 : i32
    %c0_i32_1 = arith.constant 0 : i32
    return %c0_i32, %c0_i32_0 : i32, i32
  }
  func.func @transform_5(%arg0: i32) -> (i32, i32) {
    %c0_i32 = arith.constant 0 : i32
    %c0_i32_0 = arith.constant 0 : i32
    %c0_i32_1 = arith.constant 0 : i32
    return %c0_i32, %c0_i32_0 : i32, i32
  }
  func.func @transform_6(%arg0: i32) -> (i32, i32) {
    %c0_i32 = arith.constant 0 : i32
    %c0_i32_0 = arith.constant 0 : i32
    %c0_i32_1 = arith.constant 0 : i32
    return %c0_i32, %c0_i32_0 : i32, i32
  }
  func.func @transform_7(%arg0: i32) -> (i32, i32) {
    %c0_i32 = arith.constant 0 : i32
    %c0_i32_0 = arith.constant 0 : i32
    return %arg0, %c0_i32 : i32, i32
  }
}

</mosaic_0001>

<llo_original>
// kernel: tpu_custom_call.1
$region0: #{tpu_custom_call.1}
  #allocation0 [shape = 'u32[]', space=smem, size = 0x4, offset = 0x4, fixed_abs, tag = 'smem constant byte address 0x4 - core index']
  #allocation1 [shape = 'u32[144,128]{1,0:T(1,128)}', space=vmem, size = 0x12000, scoped, tag = 'internal scratch']
  %s0 = inlined_call_operand.vmem [shape: f32[1024,32], index: 0, kind: input, shape index: {}]
  %s1 = inlined_call_operand.vmem [shape: bf16[32,128], index: 1, kind: input, shape index: {}]
  %s2 = inlined_call_operand.vmem [shape: f32[1,128], index: 2, kind: input, shape index: {}]
  %s3 = inlined_call_operand.vmem [shape: bf16[128,128], index: 3, kind: input, shape index: {}]
  %s4 = inlined_call_operand.vmem [shape: f32[1,128], index: 4, kind: input, shape index: {}]
  %s5 = inlined_call_operand.vmem [shape: bf16[128,128], index: 5, kind: input, shape index: {}]
  %s6 = inlined_call_operand.vmem [shape: f32[1,128], index: 6, kind: input, shape index: {}]
  %s7 = inlined_call_operand.hbm [shape: f32[1024,128], index: 7, kind: output, shape index: {}]
  %s8 = sld [smem:[#allocation0]]
  $region61: #{tpu_custom_call.1} parent=0
    _
  %s10 = ssub.s32 1, %s8
  %s11 = scalar_select 0, %s10, %s8
  $region1: #{tpu_custom_call.1} parent=0
    #allocation2 [shape = 'u8[524288]{0}', space=vmem, size = 0x80000, scoped, tag = 'output window, operand 0']
    #allocation3 [shape = 's32[2]{0}', space=sflag, size = 0x8, scoped, tag = 'scoped memory for tpu_custom_call.1']
    %12 = vsyncpa [#allocation3], 0
    %s13 = scalar_lea.sflag [#allocation3], 1
    %14 = vsyncpa %s13, 0
    loop: start=0, step=1, limit=4
    $region2: #{tpu_custom_call.1} parent=1 // loop_pre_header
      _
    $region3: #{tpu_custom_call.1} parent=1 // loop_header
      %s16 = sphi 0, %s20
      %p17 = scmp.ge.s32.totalorder %s16, 4
      %s26 = sphi 0, %s28
      %s29 = sphi 0, %s26
      %s30 = sphi 0, %s29
      %s46 = sphi 0, %s30
      %s50 = sphi 0, %s50
      %s52 = sphi 0, %s50
      %s53 = sphi 0, %s52
      %s67 = sphi 0, %s53
      %s71 = sphi 0, %s71
      %s73 = sphi 0, %s71
      %s74 = sphi 0, %s73
      %s88 = sphi 0, %s74
      %s92 = sphi 0, %s92
      %s94 = sphi 0, %s92
      %s95 = sphi 0, %s94
      %s109 = sphi 0, %s95
      %s113 = sphi 0, %s113
      %s115 = sphi 0, %s113
      %s116 = sphi 0, %s115
      %s130 = sphi 0, %s116
      %s134 = sphi 0, %s134
      %s136 = sphi 0, %s134
      %s137 = sphi 0, %s136
      %s151 = sphi 0, %s137
      %s155 = sphi 0, %s155
      %s157 = sphi 0, %s155
      %s158 = sphi 0, %s157
      %s172 = sphi 0, %s158
      %s178 = sphi 0, %s180
      %s181 = sphi 0, %s178
      %s182 = sphi 0, %s181
      %s198 = sphi 0, %s182
    $region4: #{tpu_custom_call.1} parent=1 // loop_header_branch
      %19 = sbr.rel (%p17) target = $region8
    $region5: #{tpu_custom_call.1} parent=1 // loop_body
      %s21 = ssub.s32 %s16, 1
      %s22 = ssub.s32 %s16, 2
      %s23 = sadd.s32 %s16, 1
      %s24 = ssub.s32 %s16, %s23
      %p25 = scmp.eq.s32.totalorder %s24, 0
      %s27 = sadd.s32 %s26, 1
      %s28 = scalar_select %p25, %s26, %s27
      %p31 = pneg %p25
      %p32 = scmp.eq.s32.totalorder %s16, 1
      %p33 = por %p31, %p32
      %p34 = scmp.ne.s32.totalorder %s26, %s29
      %p35 = scmp.eq.s32.totalorder %s16, 0
      %p36 = por %p34, %p35
      %p37 = scmp.ne.s32.totalorder %s26, %s29
      %p38 = scmp.eq.s32.totalorder %s21, 1
      %p39 = por %p37, %p38
      %p40 = scmp.ne.s32.totalorder %s29, %s30
      %p41 = scmp.eq.s32.totalorder %s21, 0
      %p42 = por %p40, %p41
      %p43 = scmp.ne.s32.totalorder %s29, %s30
      %p44 = scmp.eq.s32.totalorder %s22, 1
      %p45 = por %p43, %p44
      %p47 = scmp.ne.s32.totalorder %s30, %s46
      %p48 = scmp.eq.s32.totalorder %s22, 0
      %p49 = por %p47, %p48
      %s51 = sadd.s32 %s50, 1
      %p54 = scmp.eq.s32.totalorder %s16, 1
      %p55 = scmp.ne.s32.totalorder %s50, %s52
      %p56 = scmp.eq.s32.totalorder %s16, 0
      %p57 = por %p55, %p56
      %p58 = scmp.ne.s32.totalorder %s50, %s52
      %p59 = scmp.eq.s32.totalorder %s21, 1
      %p60 = por %p58, %p59
      %p61 = scmp.ne.s32.totalorder %s52, %s53
      %p62 = scmp.eq.s32.totalorder %s21, 0
      %p63 = por %p61, %p62
      %p64 = scmp.ne.s32.totalorder %s52, %s53
      %p65 = scmp.eq.s32.totalorder %s22, 1
      %p66 = por %p64, %p65
      %p68 = scmp.ne.s32.totalorder %s53, %s67
      %p69 = scmp.eq.s32.totalorder %s22, 0
      %p70 = por %p68, %p69
      %s72 = sadd.s32 %s71, 1
      %p75 = scmp.eq.s32.totalorder %s16, 1
      %p76 = scmp.ne.s32.totalorder %s71, %s73
      %p77 = scmp.eq.s32.totalorder %s16, 0
      %p78 = por %p76, %p77
      %p79 = scmp.ne.s32.totalorder %s71, %s73
      %p80 = scmp.eq.s32.totalorder %s21, 1
      %p81 = por %p79, %p80
      %p82 = scmp.ne.s32.totalorder %s73, %s74
      %p83 = scmp.eq.s32.totalorder %s21, 0
      %p84 = por %p82, %p83
      %p85 = scmp.ne.s32.totalorder %s73, %s74
      %p86 = scmp.eq.s32.totalorder %s22, 1
      %p87 = por %p85, %p86
      %p89 = scmp.ne.s32.totalorder %s74, %s88
      %p90 = scmp.eq.s32.totalorder %s22, 0
      %p91 = por %p89, %p90
      %s93 = sadd.s32 %s92, 1
      %p96 = scmp.eq.s32.totalorder %s16, 1
      %p97 = scmp.ne.s32.totalorder %s92, %s94
      %p98 = scmp.eq.s32.totalorder %s16, 0
      %p99 = por %p97, %p98
      %p100 = scmp.ne.s32.totalorder %s92, %s94
      %p101 = scmp.eq.s32.totalorder %s21, 1
      %p102 = por %p100, %p101
      %p103 = scmp.ne.s32.totalorder %s94, %s95
      %p104 = scmp.eq.s32.totalorder %s21, 0
      %p105 = por %p103, %p104
      %p106 = scmp.ne.s32.totalorder %s94, %s95
      %p107 = scmp.eq.s32.totalorder %s22, 1
      %p108 = por %p106, %p107
      %p110 = scmp.ne.s32.totalorder %s95, %s109
      %p111 = scmp.eq.s32.totalorder %s22, 0
      %p112 = por %p110, %p111
      %s114 = sadd.s32 %s113, 1
      %p117 = scmp.eq.s32.totalorder %s16, 1
      %p118 = scmp.ne.s32.totalorder %s113, %s115
      %p119 = scmp.eq.s32.totalorder %s16, 0
      %p120 = por %p118, %p119
      %p121 = scmp.ne.s32.totalorder %s113, %s115
      %p122 = scmp.eq.s32.totalorder %s21, 1
      %p123 = por %p121, %p122
      %p124 = scmp.ne.s32.totalorder %s115, %s116
      %p125 = scmp.eq.s32.totalorder %s21, 0
      %p126 = por %p124, %p125
      %p127 = scmp.ne.s32.totalorder %s115, %s116
      %p128 = scmp.eq.s32.totalorder %s22, 1
      %p129 = por %p127, %p128
      %p131 = scmp.ne.s32.totalorder %s116, %s130
      %p132 = scmp.eq.s32.totalorder %s22, 0
      %p133 = por %p131, %p132
      %s135 = sadd.s32 %s134, 1
      %p138 = scmp.eq.s32.totalorder %s16, 1
      %p139 = scmp.ne.s32.totalorder %s134, %s136
      %p140 = scmp.eq.s32.totalorder %s16, 0
      %p141 = por %p139, %p140
      %p142 = scmp.ne.s32.totalorder %s134, %s136
      %p143 = scmp.eq.s32.totalorder %s21, 1
      %p144 = por %p142, %p143
      %p145 = scmp.ne.s32.totalorder %s136, %s137
      %p146 = scmp.eq.s32.totalorder %s21, 0
      %p147 = por %p145, %p146
      %p148 = scmp.ne.s32.totalorder %s136, %s137
      %p149 = scmp.eq.s32.totalorder %s22, 1
      %p150 = por %p148, %p149
      %p152 = scmp.ne.s32.totalorder %s137, %s151
      %p153 = scmp.eq.s32.totalorder %s22, 0
      %p154 = por %p152, %p153
      %s156 = sadd.s32 %s155, 1
      %p159 = scmp.eq.s32.totalorder %s16, 1
      %p160 = scmp.ne.s32.totalorder %s155, %s157
      %p161 = scmp.eq.s32.totalorder %s16, 0
      %p162 = por %p160, %p161
      %p163 = scmp.ne.s32.totalorder %s155, %s157
      %p164 = scmp.eq.s32.totalorder %s21, 1
      %p165 = por %p163, %p164
      %p166 = scmp.ne.s32.totalorder %s157, %s158
      %p167 = scmp.eq.s32.totalorder %s21, 0
      %p168 = por %p166, %p167
      %p169 = scmp.ne.s32.totalorder %s157, %s158
      %p170 = scmp.eq.s32.totalorder %s22, 1
      %p171 = por %p169, %p170
      %p173 = scmp.ne.s32.totalorder %s158, %s172
      %p174 = scmp.eq.s32.totalorder %s22, 0
      %p175 = por %p173, %p174
      %s176 = ssub.s32 %s16, %s23
      %p177 = scmp.eq.s32.totalorder %s176, 0
      %s179 = sadd.s32 %s178, 1
      %s180 = scalar_select %p177, %s178, %s179
      %p183 = pneg %p177
      %p184 = scmp.eq.s32.totalorder %s16, 1
      %p185 = por %p183, %p184
      %p186 = scmp.ne.s32.totalorder %s178, %s181
      %p187 = scmp.eq.s32.totalorder %s16, 0
      %p188 = por %p186, %p187
      %p189 = scmp.ne.s32.totalorder %s178, %s181
      %p190 = scmp.eq.s32.totalorder %s21, 1
      %p191 = por %p189, %p190
      %p192 = scmp.ne.s32.totalorder %s181, %s182
      %p193 = scmp.eq.s32.totalorder %s21, 0
      %p194 = por %p192, %p193
      %p195 = scmp.ne.s32.totalorder %s181, %s182
      %p196 = scmp.eq.s32.totalorder %s22, 1
      %p197 = por %p195, %p196
      %p199 = scmp.ne.s32.totalorder %s182, %s198
      %p200 = scmp.eq.s32.totalorder %s22, 0
      %p201 = por %p199, %p200
      %p202 = scmp.le.s32.totalorder 1, %s16
      %p203 = scmp.lt.s32.totalorder %s16, 3
      %p204 = pnand %p202, %p203
      %p205 = pneg %p204
      // Predicated region
      $region9: #{tpu_custom_call.1} parent=5 // pred_check
        _
      $region10: #{tpu_custom_call.1} parent=5 // pred_check_branch
        %207 = sbr.rel (%p204) target = $region12
      $region11: #{tpu_custom_call.1} parent=5 // pred_region
        %s208 = ssub.s32 %s16, 1
        // Predicated region
        $region13: #{tpu_custom_call.1} parent=11 // pred_check
          %p209 = pneg %p63
        $region14: #{tpu_custom_call.1} parent=11 // pred_check_branch
          %211 = sbr.rel (%p209) target = $region16
        $region15: #{tpu_custom_call.1} parent=11 // pred_region
          _
        $region16: #{tpu_custom_call.1} parent=11 // pred_fallthru
          _
        // Predicated region
        $region17: #{tpu_custom_call.1} parent=11 // pred_check
          %p212 = pneg %p84
        $region18: #{tpu_custom_call.1} parent=11 // pred_check_branch
          %214 = sbr.rel (%p212) target = $region20
        $region19: #{tpu_custom_call.1} parent=11 // pred_region
          _
        $region20: #{tpu_custom_call.1} parent=11 // pred_fallthru
          _
        // Predicated region
        $region21: #{tpu_custom_call.1} parent=11 // pred_check
          %p215 = pneg %p105
        $region22: #{tpu_custom_call.1} parent=11 // pred_check_branch
          %217 = sbr.rel (%p215) target = $region24
        $region23: #{tpu_custom_call.1} parent=11 // pred_region
          _
        $region24: #{tpu_custom_call.1} parent=11 // pred_fallthru
          _
        // Predicated region
        $region25: #{tpu_custom_call.1} parent=11 // pred_check
          %p218 = pneg %p126
        $region26: #{tpu_custom_call.1} parent=11 // pred_check_branch
          %220 = sbr.rel (%p218) target = $region28
        $region27: #{tpu_custom_call.1} parent=11 // pred_region
          _
        $region28: #{tpu_custom_call.1} parent=11 // pred_fallthru
          _
        // Predicated region
        $region29: #{tpu_custom_call.1} parent=11 // pred_check
          %p221 = pneg %p147
        $region30: #{tpu_custom_call.1} parent=11 // pred_check_branch
          %223 = sbr.rel (%p221) target = $region32
        $region31: #{tpu_custom_call.1} parent=11 // pred_region
          _
        $region32: #{tpu_custom_call.1} parent=11 // pred_fallthru
          _
        // Predicated region
        $region33: #{tpu_custom_call.1} parent=11 // pred_check
          %p224 = pneg %p168
        $region34: #{tpu_custom_call.1} parent=11 // pred_check_branch
          %226 = sbr.rel (%p224) target = $region36
        $region35: #{tpu_custom_call.1} parent=11 // pred_region
          _
        $region36: #{tpu_custom_call.1} parent=11 // pred_fallthru
          _
      $region12: #{tpu_custom_call.1} parent=5 // pred_fallthru
        _
      %p227 = scmp.lt.s32.totalorder %s16, 2
      // Predicated region
      $region37: #{tpu_custom_call.1} parent=5 // pred_check
        %p228 = pneg %p227
      $region38: #{tpu_custom_call.1} parent=5 // pred_check_branch
        %230 = sbr.rel (%p228) target = $region40
      $region39: #{tpu_custom_call.1} parent=5 // pred_region
        // Predicated region
        $region41: #{tpu_custom_call.1} parent=39 // pred_check
          %p231 = pneg %p36
        $region42: #{tpu_custom_call.1} parent=39 // pred_check_branch
          %233 = sbr.rel (%p231) target = $region44
        $region43: #{tpu_custom_call.1} parent=39 // pred_region
          %s234 = smul.u32 64, %s16
          %p235 = scmp.lt.s32.totalorder %s234, 127
          %s236 = scalar_select %p235, %s234, 127
          %s237 = smul.addr %s236, 8
          %s238 = scalar_lea.vmem %s0, %s237
          %s239 = smul.u32 64, %s16
        $region44: #{tpu_custom_call.1} parent=39 // pred_fallthru
          _
      $region40: #{tpu_custom_call.1} parent=5 // pred_fallthru
        _
      %p240 = scmp.le.s32.totalorder 1, %s16
      %p241 = scmp.lt.s32.totalorder %s16, 3
      %p242 = pnand %p240, %p241
      %p243 = pneg %p242
      // Predicated region
      $region45: #{tpu_custom_call.1} parent=5 // pred_check
        _
      $region46: #{tpu_custom_call.1} parent=5 // pred_check_branch
        %245 = sbr.rel (%p242) target = $region48
      $region47: #{tpu_custom_call.1} parent=5 // pred_region
        %s246 = ssub.s32 %s16, 1
        %s247 = smul.u32 64, %s21
        %p248 = scmp.lt.s32.totalorder %s247, 127
        %s249 = scalar_select %p248, %s247, 127
        %s250 = smul.addr %s249, 8
        %s251 = scalar_lea.vmem %s0, %s250
        %p252 = pneg %p42
        %p253 = pneg %p39
        %p254 = pneg %p63
        %p255 = pneg %p60
        %p256 = pneg %p84
        %p257 = pneg %p81
        %p258 = pneg %p105
        %p259 = pneg %p102
        %p260 = pneg %p126
        %p261 = pneg %p123
        %p262 = pneg %p147
        %p263 = pneg %p144
        %p264 = pneg %p168
        %p265 = pneg %p165
        %p266 = pneg %p194
        %p267 = pneg %p191
        %s268 = sand.u32 %s181, 1
        %s269 = scalar_lea.sflag [#allocation3], %s268
        %s270 = sand.u32 %s181, 1
        %s271 = smul.addr %s270, 512
        %s272 = scalar_lea.vmem [#allocation2], %s271
        %s273 = smul.u32 64, %s21
        %p274 = scmp.lt.s32.totalorder %s273, 127
        %s275 = scalar_select %p274, %s273, 127
        %s276 = smul.addr %s275, 8
        %s277 = scalar_lea.vmem %s0, %s276
        %s278 = smul.u32 64, %s21
        %s279 = smul.u32 64, %s21
        %v281 = vld [vmem:[%s277] sm:$0xff]
        %v282 = vld [vmem:[%s277 + $0x8] sm:$0xff]
        %v283 = vld [vmem:[%s277 + $0x10] sm:$0xff]
        %v284 = vld [vmem:[%s277 + $0x18] sm:$0xff]
        %v285 = vld [vmem:[%s277 + $0x20] sm:$0xff]
        %v286 = vld [vmem:[%s277 + $0x28] sm:$0xff]
        %v287 = vld [vmem:[%s277 + $0x30] sm:$0xff]
        %v288 = vld [vmem:[%s277 + $0x38] sm:$0xff]
        %v289 = vld [vmem:[%s277 + $0x40] sm:$0xff]
        %v290 = vld [vmem:[%s277 + $0x48] sm:$0xff]
        %v291 = vld [vmem:[%s277 + $0x50] sm:$0xff]
        %v292 = vld [vmem:[%s277 + $0x58] sm:$0xff]
        %v293 = vld [vmem:[%s277 + $0x60] sm:$0xff]
        %v294 = vld [vmem:[%s277 + $0x68] sm:$0xff]
        %v295 = vld [vmem:[%s277 + $0x70] sm:$0xff]
        %v296 = vld [vmem:[%s277 + $0x78] sm:$0xff]
        %v297 = vld [vmem:[%s277 + $0x80] sm:$0xff]
        %v298 = vld [vmem:[%s277 + $0x88] sm:$0xff]
        %v299 = vld [vmem:[%s277 + $0x90] sm:$0xff]
        %v300 = vld [vmem:[%s277 + $0x98] sm:$0xff]
        %v301 = vld [vmem:[%s277 + $0xa0] sm:$0xff]
        %v302 = vld [vmem:[%s277 + $0xa8] sm:$0xff]
        %v303 = vld [vmem:[%s277 + $0xb0] sm:$0xff]
        %v304 = vld [vmem:[%s277 + $0xb8] sm:$0xff]
        %v305 = vld [vmem:[%s277 + $0xc0] sm:$0xff]
        %v306 = vld [vmem:[%s277 + $0xc8] sm:$0xff]
        %v307 = vld [vmem:[%s277 + $0xd0] sm:$0xff]
        %v308 = vld [vmem:[%s277 + $0xd8] sm:$0xff]
        %v309 = vld [vmem:[%s277 + $0xe0] sm:$0xff]
        %v310 = vld [vmem:[%s277 + $0xe8] sm:$0xff]
        %v311 = vld [vmem:[%s277 + $0xf0] sm:$0xff]
        %v312 = vld [vmem:[%s277 + $0xf8] sm:$0xff]
        %v313 = vld [vmem:[%s277 + $0x100] sm:$0xff]
        %v314 = vld [vmem:[%s277 + $0x108] sm:$0xff]
        %v315 = vld [vmem:[%s277 + $0x110] sm:$0xff]
        %v316 = vld [vmem:[%s277 + $0x118] sm:$0xff]
        %v317 = vld [vmem:[%s277 + $0x120] sm:$0xff]
        %v318 = vld [vmem:[%s277 + $0x128] sm:$0xff]
        %v319 = vld [vmem:[%s277 + $0x130] sm:$0xff]
        %v320 = vld [vmem:[%s277 + $0x138] sm:$0xff]
        %v321 = vld [vmem:[%s277 + $0x140] sm:$0xff]
        %v322 = vld [vmem:[%s277 + $0x148] sm:$0xff]
        %v323 = vld [vmem:[%s277 + $0x150] sm:$0xff]
        %v324 = vld [vmem:[%s277 + $0x158] sm:$0xff]
        %v325 = vld [vmem:[%s277 + $0x160] sm:$0xff]
        %v326 = vld [vmem:[%s277 + $0x168] sm:$0xff]
        %v327 = vld [vmem:[%s277 + $0x170] sm:$0xff]
        %v328 = vld [vmem:[%s277 + $0x178] sm:$0xff]
        %v329 = vld [vmem:[%s277 + $0x180] sm:$0xff]
        %v330 = vld [vmem:[%s277 + $0x188] sm:$0xff]
        %v331 = vld [vmem:[%s277 + $0x190] sm:$0xff]
        %v332 = vld [vmem:[%s277 + $0x198] sm:$0xff]
        %v333 = vld [vmem:[%s277 + $0x1a0] sm:$0xff]
        %v334 = vld [vmem:[%s277 + $0x1a8] sm:$0xff]
        %v335 = vld [vmem:[%s277 + $0x1b0] sm:$0xff]
        %v336 = vld [vmem:[%s277 + $0x1b8] sm:$0xff]
        %v337 = vld [vmem:[%s277 + $0x1c0] sm:$0xff]
        %v338 = vld [vmem:[%s277 + $0x1c8] sm:$0xff]
        %v339 = vld [vmem:[%s277 + $0x1d0] sm:$0xff]
        %v340 = vld [vmem:[%s277 + $0x1d8] sm:$0xff]
        %v341 = vld [vmem:[%s277 + $0x1e0] sm:$0xff]
        %v342 = vld [vmem:[%s277 + $0x1e8] sm:$0xff]
        %v343 = vld [vmem:[%s277 + $0x1f0] sm:$0xff]
        %v344 = vld [vmem:[%s277 + $0x1f8] sm:$0xff]
        %v345 = vpack.c.bf16 %v282, %v281
        %v346 = vpack.c.bf16 %v284, %v283
        %v347 = vpack.c.bf16 %v286, %v285
        %v348 = vpack.c.bf16 %v288, %v287
        %v349 = vpack.c.bf16 %v290, %v289
        %v350 = vpack.c.bf16 %v292, %v291
        %v351 = vpack.c.bf16 %v294, %v293
        %v352 = vpack.c.bf16 %v296, %v295
        %v353 = vpack.c.bf16 %v298, %v297
        %v354 = vpack.c.bf16 %v300, %v299
        %v355 = vpack.c.bf16 %v302, %v301
        %v356 = vpack.c.bf16 %v304, %v303
        %v357 = vpack.c.bf16 %v306, %v305
        %v358 = vpack.c.bf16 %v308, %v307
        %v359 = vpack.c.bf16 %v310, %v309
        %v360 = vpack.c.bf16 %v312, %v311
        %v361 = vpack.c.bf16 %v314, %v313
        %v362 = vpack.c.bf16 %v316, %v315
        %v363 = vpack.c.bf16 %v318, %v317
        %v364 = vpack.c.bf16 %v320, %v319
        %v365 = vpack.c.bf16 %v322, %v321
        %v366 = vpack.c.bf16 %v324, %v323
        %v367 = vpack.c.bf16 %v326, %v325
        %v368 = vpack.c.bf16 %v328, %v327
        %v369 = vpack.c.bf16 %v330, %v329
        %v370 = vpack.c.bf16 %v332, %v331
        %v371 = vpack.c.bf16 %v334, %v333
        %v372 = vpack.c.bf16 %v336, %v335
        %v373 = vpack.c.bf16 %v338, %v337
        %v374 = vpack.c.bf16 %v340, %v339
        %v375 = vpack.c.bf16 %v342, %v341
        %v376 = vpack.c.bf16 %v344, %v343
        %v377 = vld [vmem:[%s1] sm:$0xf]
        %v378 = vld [vmem:[%s1 + $0x4] sm:$0xf]
        %v379 = vld [vmem:[%s1 + $0x8] sm:$0xf]
        %v380 = vld [vmem:[%s1 + $0xc] sm:$0xf]
        %v381 = vld [vmem:[%s2] sm:$0x1]
        %v383 = vlaneseq
        %v384 = vshrl.u32 %v383, 7
        %v385 = vsub.s32 0, %v384
        %v386 = vrot.slane %v381, %v385
        %v392 = vunpack.c.l.b16 %v377
        %v393 = vunpack.c.l.b16 %v378
        %v394 = vunpack.c.l.b16 %v379
        %v395 = vunpack.c.l.b16 %v380
        %v396 = vpack.c.b16 %v393, %v392
        %v397 = vpack.c.b16 %v395, %v394
        %vm400 = vcmask 261120
        %v402 = vsel %vm400, %v345, 0
        %v405 = vsel %vm400, %v346, 0
        %v408 = vsel %vm400, %v347, 0
        %v411 = vsel %vm400, %v348, 0
        %v414 = vsel %vm400, %v349, 0
        %v417 = vsel %vm400, %v350, 0
        %v420 = vsel %vm400, %v351, 0
        %v423 = vsel %vm400, %v352, 0
        %v426 = vsel %vm400, %v353, 0
        %v429 = vsel %vm400, %v354, 0
        %v432 = vsel %vm400, %v355, 0
        %v435 = vsel %vm400, %v356, 0
        %v438 = vsel %vm400, %v357, 0
        %v441 = vsel %vm400, %v358, 0
        %v444 = vsel %vm400, %v359, 0
        %v447 = vsel %vm400, %v360, 0
        %v450 = vsel %vm400, %v361, 0
        %v453 = vsel %vm400, %v362, 0
        %v456 = vsel %vm400, %v363, 0
        %v459 = vsel %vm400, %v364, 0
        %v462 = vsel %vm400, %v365, 0
        %v465 = vsel %vm400, %v366, 0
        %v468 = vsel %vm400, %v367, 0
        %v471 = vsel %vm400, %v368, 0
        %v474 = vsel %vm400, %v369, 0
        %v477 = vsel %vm400, %v370, 0
        %v480 = vsel %vm400, %v371, 0
        %v483 = vsel %vm400, %v372, 0
        %v486 = vsel %vm400, %v373, 0
        %v489 = vsel %vm400, %v374, 0
        %v492 = vsel %vm400, %v375, 0
        %v495 = vsel %vm400, %v376, 0
        %497 = vmatprep.subr.bf16.mxu0 0
        %498 = vmatpush1.bf16.msra.mxu0 0
        %499 = vmatprep.subr.bf16.mxu0 0
        %500 = vmatpush1.bf16.msra.mxu0 0
        %501 = vmatprep.subr.bf16.mxu0 0
        %502 = vmatpush1.bf16.msra.mxu0 0
        %503 = vmatprep.subr.bf16.mxu0 0
        %504 = vmatpush1.bf16.msra.mxu0 0
        %505 = vmatprep.subr.bf16.mxu0 0
        %506 = vmatpush1.bf16.msra.mxu0 0
        %507 = vmatprep.subr.bf16.mxu0 0
        %508 = vmatpush1.bf16.msra.mxu0 0
        %509 = vmatprep.subr.bf16.mxu0 0
        %510 = vmatpush1.bf16.msra.mxu0 %v397
        %511 = vmatprep.subr.bf16.mxu0 0
        %512 = vmatpush1.bf16.msra.mxu0 %v396
        %513 = vmatprep.subr.bf16.mxu0 0
        %514 = vmatpush2.bf16.msra.mxu0 0
        %515 = vmatprep.subr.bf16.mxu0 0
        %516 = vmatpush2.bf16.msra.mxu0 0
        %517 = vmatprep.subr.bf16.mxu0 0
        %518 = vmatpush2.bf16.msra.mxu0 0
        %519 = vmatprep.subr.bf16.mxu0 0
        %520 = vmatpush2.bf16.msra.mxu0 0
        %521 = vmatprep.subr.bf16.mxu0 0
        %522 = vmatpush2.bf16.msra.mxu0 0
        %523 = vmatprep.subr.bf16.mxu0 0
        %524 = vmatpush2.bf16.msra.mxu0 0
        %525 = vmatprep.subr.bf16.mxu0 0
        %526 = vmatpush2.bf16.msra.mxu0 0
        %527 = vmatprep.subr.bf16.mxu0 0
        %528 = vmatpush2.bf16.msra.mxu0 0
        %529 = vmatprep.mubr.bf16.mxu0 0
        %530 = vmatmul.mubr.bf16.gmra.mxu0 %v402
        %v531 = vpop.f32.mrf.mxu0
        %v532 = vadd.f32 %v386, %v531
        %v533 = vpop.f32.mrf.mxu0
        %v534 = vpop.f32.mrf.mxu0
        %v535 = vadd.f32 %v386, %v534
        %v536 = vpop.f32.mrf.mxu0
        %537 = vmatprep.mubr.bf16.mxu0 0
        %538 = vmatmul.mubr.bf16.gmra.mxu0 %v405
        %v539 = vpop.f32.mrf.mxu0
        %v540 = vadd.f32 %v386, %v539
        %v541 = vpop.f32.mrf.mxu0
        %v542 = vpop.f32.mrf.mxu0
        %v543 = vadd.f32 %v386, %v542
        %v544 = vpop.f32.mrf.mxu0
        %545 = vmatprep.mubr.bf16.mxu0 0
        %546 = vmatmul.mubr.bf16.gmra.mxu0 %v408
        %v547 = vpop.f32.mrf.mxu0
        %v548 = vadd.f32 %v386, %v547
        %v549 = vpop.f32.mrf.mxu0
        %v550 = vpop.f32.mrf.mxu0
        %v551 = vadd.f32 %v386, %v550
        %v552 = vpop.f32.mrf.mxu0
        %553 = vmatprep.mubr.bf16.mxu0 0
        %554 = vmatmul.mubr.bf16.gmra.mxu0 %v411
        %v555 = vpop.f32.mrf.mxu0
        %v556 = vadd.f32 %v386, %v555
        %v557 = vpop.f32.mrf.mxu0
        %v558 = vpop.f32.mrf.mxu0
        %v559 = vadd.f32 %v386, %v558
        %v560 = vpop.f32.mrf.mxu0
        %561 = vmatprep.mubr.bf16.mxu0 0
        %562 = vmatmul.mubr.bf16.gmra.mxu0 %v414
        %v563 = vpop.f32.mrf.mxu0
        %v564 = vadd.f32 %v386, %v563
        %v565 = vpop.f32.mrf.mxu0
        %v566 = vpop.f32.mrf.mxu0
        %v567 = vadd.f32 %v386, %v566
        %v568 = vpop.f32.mrf.mxu0
        %569 = vmatprep.mubr.bf16.mxu0 0
        %570 = vmatmul.mubr.bf16.gmra.mxu0 %v417
        %v571 = vpop.f32.mrf.mxu0
        %v572 = vadd.f32 %v386, %v571
        %v573 = vpop.f32.mrf.mxu0
        %v574 = vpop.f32.mrf.mxu0
        %v575 = vadd.f32 %v386, %v574
        %v576 = vpop.f32.mrf.mxu0
        %577 = vmatprep.mubr.bf16.mxu0 0
        %578 = vmatmul.mubr.bf16.gmra.mxu0 %v420
        %v579 = vpop.f32.mrf.mxu0
        %v580 = vadd.f32 %v386, %v579
        %v581 = vpop.f32.mrf.mxu0
        %v582 = vpop.f32.mrf.mxu0
        %v583 = vadd.f32 %v386, %v582
        %v584 = vpop.f32.mrf.mxu0
        %585 = vmatprep.mubr.bf16.mxu0 0
        %586 = vmatmul.mubr.bf16.gmra.mxu0 %v423
        %v587 = vpop.f32.mrf.mxu0
        %v588 = vadd.f32 %v386, %v587
        %v589 = vpop.f32.mrf.mxu0
        %v590 = vpop.f32.mrf.mxu0
        %v591 = vadd.f32 %v386, %v590
        %v592 = vpop.f32.mrf.mxu0
        %593 = vmatprep.mubr.bf16.mxu0 0
        %594 = vmatmul.mubr.bf16.gmra.mxu0 %v426
        %v595 = vpop.f32.mrf.mxu0
        %v596 = vadd.f32 %v386, %v595
        %v597 = vpop.f32.mrf.mxu0
        %v598 = vpop.f32.mrf.mxu0
        %v599 = vadd.f32 %v386, %v598
        %v600 = vpop.f32.mrf.mxu0
        %601 = vmatprep.mubr.bf16.mxu0 0
        %602 = vmatmul.mubr.bf16.gmra.mxu0 %v429
        %v603 = vpop.f32.mrf.mxu0
        %v604 = vadd.f32 %v386, %v603
        %v605 = vpop.f32.mrf.mxu0
        %v606 = vpop.f32.mrf.mxu0
        %v607 = vadd.f32 %v386, %v606
        %v608 = vpop.f32.mrf.mxu0
        %609 = vmatprep.mubr.bf16.mxu0 0
        %610 = vmatmul.mubr.bf16.gmra.mxu0 %v432
        %v611 = vpop.f32.mrf.mxu0
        %v612 = vadd.f32 %v386, %v611
        %v613 = vpop.f32.mrf.mxu0
        %v614 = vpop.f32.mrf.mxu0
        %v615 = vadd.f32 %v386, %v614
        %v616 = vpop.f32.mrf.mxu0
        %617 = vmatprep.mubr.bf16.mxu0 0
        %618 = vmatmul.mubr.bf16.gmra.mxu0 %v435
        %v619 = vpop.f32.mrf.mxu0
        %v620 = vadd.f32 %v386, %v619
        %v621 = vpop.f32.mrf.mxu0
        %v622 = vpop.f32.mrf.mxu0
        %v623 = vadd.f32 %v386, %v622
        %v624 = vpop.f32.mrf.mxu0
        %625 = vmatprep.mubr.bf16.mxu0 0
        %626 = vmatmul.mubr.bf16.gmra.mxu0 %v438
        %v627 = vpop.f32.mrf.mxu0
        %v628 = vadd.f32 %v386, %v627
        %v629 = vpop.f32.mrf.mxu0
        %v630 = vpop.f32.mrf.mxu0
        %v631 = vadd.f32 %v386, %v630
        %v632 = vpop.f32.mrf.mxu0
        %633 = vmatprep.mubr.bf16.mxu0 0
        %634 = vmatmul.mubr.bf16.gmra.mxu0 %v441
        %v635 = vpop.f32.mrf.mxu0
        %v636 = vadd.f32 %v386, %v635
        %v637 = vpop.f32.mrf.mxu0
        %v638 = vpop.f32.mrf.mxu0
        %v639 = vadd.f32 %v386, %v638
        %v640 = vpop.f32.mrf.mxu0
        %641 = vmatprep.mubr.bf16.mxu0 0
        %642 = vmatmul.mubr.bf16.gmra.mxu0 %v444
        %v643 = vpop.f32.mrf.mxu0
        %v644 = vadd.f32 %v386, %v643
        %v645 = vpop.f32.mrf.mxu0
        %v646 = vpop.f32.mrf.mxu0
        %v647 = vadd.f32 %v386, %v646
        %v648 = vpop.f32.mrf.mxu0
        %649 = vmatprep.mubr.bf16.mxu0 0
        %650 = vmatmul.mubr.bf16.gmra.mxu0 %v447
        %v651 = vpop.f32.mrf.mxu0
        %v652 = vadd.f32 %v386, %v651
        %v653 = vpop.f32.mrf.mxu0
        %v654 = vpop.f32.mrf.mxu0
        %v655 = vadd.f32 %v386, %v654
        %v656 = vpop.f32.mrf.mxu0
        %657 = vmatprep.mubr.bf16.mxu0 0
        %658 = vmatmul.mubr.bf16.gmra.mxu0 %v450
        %v659 = vpop.f32.mrf.mxu0
        %v660 = vadd.f32 %v386, %v659
        %v661 = vpop.f32.mrf.mxu0
        %v662 = vpop.f32.mrf.mxu0
        %v663 = vadd.f32 %v386, %v662
        %v664 = vpop.f32.mrf.mxu0
        %665 = vmatprep.mubr.bf16.mxu0 0
        %666 = vmatmul.mubr.bf16.gmra.mxu0 %v453
        %v667 = vpop.f32.mrf.mxu0
        %v668 = vadd.f32 %v386, %v667
        %v669 = vpop.f32.mrf.mxu0
        %v670 = vpop.f32.mrf.mxu0
        %v671 = vadd.f32 %v386, %v670
        %v672 = vpop.f32.mrf.mxu0
        %673 = vmatprep.mubr.bf16.mxu0 0
        %674 = vmatmul.mubr.bf16.gmra.mxu0 %v456
        %v675 = vpop.f32.mrf.mxu0
        %v676 = vadd.f32 %v386, %v675
        %v677 = vpop.f32.mrf.mxu0
        %v678 = vpop.f32.mrf.mxu0
        %v679 = vadd.f32 %v386, %v678
        %v680 = vpop.f32.mrf.mxu0
        %681 = vmatprep.mubr.bf16.mxu0 0
        %682 = vmatmul.mubr.bf16.gmra.mxu0 %v459
        %v683 = vpop.f32.mrf.mxu0
        %v684 = vadd.f32 %v386, %v683
        %v685 = vpop.f32.mrf.mxu0
        %v686 = vpop.f32.mrf.mxu0
        %v687 = vadd.f32 %v386, %v686
        %v688 = vpop.f32.mrf.mxu0
        %689 = vmatprep.mubr.bf16.mxu0 0
        %690 = vmatmul.mubr.bf16.gmra.mxu0 %v462
        %v691 = vpop.f32.mrf.mxu0
        %v692 = vadd.f32 %v386, %v691
        %v693 = vpop.f32.mrf.mxu0
        %v694 = vpop.f32.mrf.mxu0
        %v695 = vadd.f32 %v386, %v694
        %v696 = vpop.f32.mrf.mxu0
        %697 = vmatprep.mubr.bf16.mxu0 0
        %698 = vmatmul.mubr.bf16.gmra.mxu0 %v465
        %v699 = vpop.f32.mrf.mxu0
        %v700 = vadd.f32 %v386, %v699
        %v701 = vpop.f32.mrf.mxu0
        %v702 = vpop.f32.mrf.mxu0
        %v703 = vadd.f32 %v386, %v702
        %v704 = vpop.f32.mrf.mxu0
        %705 = vmatprep.mubr.bf16.mxu0 0
        %706 = vmatmul.mubr.bf16.gmra.mxu0 %v468
        %v707 = vpop.f32.mrf.mxu0
        %v708 = vadd.f32 %v386, %v707
        %v709 = vpop.f32.mrf.mxu0
        %v710 = vpop.f32.mrf.mxu0
        %v711 = vadd.f32 %v386, %v710
        %v712 = vpop.f32.mrf.mxu0
        %713 = vmatprep.mubr.bf16.mxu0 0
        %714 = vmatmul.mubr.bf16.gmra.mxu0 %v471
        %v715 = vpop.f32.mrf.mxu0
        %v716 = vadd.f32 %v386, %v715
        %v717 = vpop.f32.mrf.mxu0
        %v718 = vpop.f32.mrf.mxu0
        %v719 = vadd.f32 %v386, %v718
        %v720 = vpop.f32.mrf.mxu0
        %721 = vmatprep.mubr.bf16.mxu0 0
        %722 = vmatmul.mubr.bf16.gmra.mxu0 %v474
        %v723 = vpop.f32.mrf.mxu0
        %v724 = vadd.f32 %v386, %v723
        %v725 = vpop.f32.mrf.mxu0
        %v726 = vpop.f32.mrf.mxu0
        %v727 = vadd.f32 %v386, %v726
        %v728 = vpop.f32.mrf.mxu0
        %729 = vmatprep.mubr.bf16.mxu0 0
        %730 = vmatmul.mubr.bf16.gmra.mxu0 %v477
        %v731 = vpop.f32.mrf.mxu0
        %v732 = vadd.f32 %v386, %v731
        %v733 = vpop.f32.mrf.mxu0
        %v734 = vpop.f32.mrf.mxu0
        %v735 = vadd.f32 %v386, %v734
        %v736 = vpop.f32.mrf.mxu0
        %737 = vmatprep.mubr.bf16.mxu0 0
        %738 = vmatmul.mubr.bf16.gmra.mxu0 %v480
        %v739 = vpop.f32.mrf.mxu0
        %v740 = vadd.f32 %v386, %v739
        %v741 = vpop.f32.mrf.mxu0
        %v742 = vpop.f32.mrf.mxu0
        %v743 = vadd.f32 %v386, %v742
        %v744 = vpop.f32.mrf.mxu0
        %745 = vmatprep.mubr.bf16.mxu0 0
        %746 = vmatmul.mubr.bf16.gmra.mxu0 %v483
        %v747 = vpop.f32.mrf.mxu0
        %v748 = vadd.f32 %v386, %v747
        %v749 = vpop.f32.mrf.mxu0
        %v750 = vpop.f32.mrf.mxu0
        %v751 = vadd.f32 %v386, %v750
        %v752 = vpop.f32.mrf.mxu0
        %753 = vmatprep.mubr.bf16.mxu0 0
        %754 = vmatmul.mubr.bf16.gmra.mxu0 %v486
        %v755 = vpop.f32.mrf.mxu0
        %v756 = vadd.f32 %v386, %v755
        %v757 = vpop.f32.mrf.mxu0
        %v758 = vpop.f32.mrf.mxu0
        %v759 = vadd.f32 %v386, %v758
        %v760 = vpop.f32.mrf.mxu0
        %761 = vmatprep.mubr.bf16.mxu0 0
        %762 = vmatmul.mubr.bf16.gmra.mxu0 %v489
        %v763 = vpop.f32.mrf.mxu0
        %v764 = vadd.f32 %v386, %v763
        %v765 = vpop.f32.mrf.mxu0
        %v766 = vpop.f32.mrf.mxu0
        %v767 = vadd.f32 %v386, %v766
        %v768 = vpop.f32.mrf.mxu0
        %769 = vmatprep.mubr.bf16.mxu0 0
        %770 = vmatmul.mubr.bf16.gmra.mxu0 %v492
        %v771 = vpop.f32.mrf.mxu0
        %v772 = vadd.f32 %v386, %v771
        %v773 = vpop.f32.mrf.mxu0
        %v774 = vpop.f32.mrf.mxu0
        %v775 = vadd.f32 %v386, %v774
        %v776 = vpop.f32.mrf.mxu0
        %777 = vmatprep.mubr.bf16.mxu0 0
        %778 = vmatmul.mubr.bf16.gmra.mxu0 %v495
        %v779 = vpop.f32.mrf.mxu0
        %v780 = vadd.f32 %v386, %v779
        %v781 = vpop.f32.mrf.mxu0
        %v782 = vpop.f32.mrf.mxu0
        %v783 = vadd.f32 %v386, %v782
        %v784 = vpop.f32.mrf.mxu0
        %785 = vdwg.mxu0
        %v786 = vmax.f32 %v532, 0.0
        %v787 = vmax.f32 %v535, 0.0
        %v788 = vmax.f32 %v540, 0.0
        %v789 = vmax.f32 %v543, 0.0
        %v790 = vmax.f32 %v548, 0.0
        %v791 = vmax.f32 %v551, 0.0
        %v792 = vmax.f32 %v556, 0.0
        %v793 = vmax.f32 %v559, 0.0
        %v794 = vmax.f32 %v564, 0.0
        %v795 = vmax.f32 %v567, 0.0
        %v796 = vmax.f32 %v572, 0.0
        %v797 = vmax.f32 %v575, 0.0
        %v798 = vmax.f32 %v580, 0.0
        %v799 = vmax.f32 %v583, 0.0
        %v800 = vmax.f32 %v588, 0.0
        %v801 = vmax.f32 %v591, 0.0
        %v802 = vmax.f32 %v596, 0.0
        %v803 = vmax.f32 %v599, 0.0
        %v804 = vmax.f32 %v604, 0.0
        %v805 = vmax.f32 %v607, 0.0
        %v806 = vmax.f32 %v612, 0.0
        %v807 = vmax.f32 %v615, 0.0
        %v808 = vmax.f32 %v620, 0.0
        %v809 = vmax.f32 %v623, 0.0
        %v810 = vmax.f32 %v628, 0.0
        %v811 = vmax.f32 %v631, 0.0
        %v812 = vmax.f32 %v636, 0.0
        %v813 = vmax.f32 %v639, 0.0
        %v814 = vmax.f32 %v644, 0.0
        %v815 = vmax.f32 %v647, 0.0
        %v816 = vmax.f32 %v652, 0.0
        %v817 = vmax.f32 %v655, 0.0
        %v818 = vmax.f32 %v660, 0.0
        %v819 = vmax.f32 %v663, 0.0
        %v820 = vmax.f32 %v668, 0.0
        %v821 = vmax.f32 %v671, 0.0
        %v822 = vmax.f32 %v676, 0.0
        %v823 = vmax.f32 %v679, 0.0
        %v824 = vmax.f32 %v684, 0.0
        %v825 = vmax.f32 %v687, 0.0
        %v826 = vmax.f32 %v692, 0.0
        %v827 = vmax.f32 %v695, 0.0
        %v828 = vmax.f32 %v700, 0.0
        %v829 = vmax.f32 %v703, 0.0
        %v830 = vmax.f32 %v708, 0.0
        %v831 = vmax.f32 %v711, 0.0
        %v832 = vmax.f32 %v716, 0.0
        %v833 = vmax.f32 %v719, 0.0
        %v834 = vmax.f32 %v724, 0.0
        %v835 = vmax.f32 %v727, 0.0
        %v836 = vmax.f32 %v732, 0.0
        %v837 = vmax.f32 %v735, 0.0
        %v838 = vmax.f32 %v740, 0.0
        %v839 = vmax.f32 %v743, 0.0
        %v840 = vmax.f32 %v748, 0.0
        %v841 = vmax.f32 %v751, 0.0
        %v842 = vmax.f32 %v756, 0.0
        %v843 = vmax.f32 %v759, 0.0
        %v844 = vmax.f32 %v764, 0.0
        %v845 = vmax.f32 %v767, 0.0
        %v846 = vmax.f32 %v772, 0.0
        %v847 = vmax.f32 %v775, 0.0
        %v848 = vmax.f32 %v780, 0.0
        %v849 = vmax.f32 %v783, 0.0
        %v850 = vpack.c.bf16 %v787, %v786
        %v851 = vpack.c.bf16 %v789, %v788
        %v852 = vpack.c.bf16 %v791, %v790
        %v853 = vpack.c.bf16 %v793, %v792
        %v854 = vpack.c.bf16 %v795, %v794
        %v855 = vpack.c.bf16 %v797, %v796
        %v856 = vpack.c.bf16 %v799, %v798
        %v857 = vpack.c.bf16 %v801, %v800
        %v858 = vpack.c.bf16 %v803, %v802
        %v859 = vpack.c.bf16 %v805, %v804
        %v860 = vpack.c.bf16 %v807, %v806
        %v861 = vpack.c.bf16 %v809, %v808
        %v862 = vpack.c.bf16 %v811, %v810
        %v863 = vpack.c.bf16 %v813, %v812
        %v864 = vpack.c.bf16 %v815, %v814
        %v865 = vpack.c.bf16 %v817, %v816
        %v866 = vpack.c.bf16 %v819, %v818
        %v867 = vpack.c.bf16 %v821, %v820
        %v868 = vpack.c.bf16 %v823, %v822
        %v869 = vpack.c.bf16 %v825, %v824
        %v870 = vpack.c.bf16 %v827, %v826
        %v871 = vpack.c.bf16 %v829, %v828
        %v872 = vpack.c.bf16 %v831, %v830
        %v873 = vpack.c.bf16 %v833, %v832
        %v874 = vpack.c.bf16 %v835, %v834
        %v875 = vpack.c.bf16 %v837, %v836
        %v876 = vpack.c.bf16 %v839, %v838
        %v877 = vpack.c.bf16 %v841, %v840
        %v878 = vpack.c.bf16 %v843, %v842
        %v879 = vpack.c.bf16 %v845, %v844
        %v880 = vpack.c.bf16 %v847, %v846
        %v881 = vpack.c.bf16 %v849, %v848
        %v882 = vld [vmem:[%s3] sm:$0xf]
        %v883 = vld [vmem:[%s3 + $0x4] sm:$0xf]
        %v884 = vld [vmem:[%s3 + $0x8] sm:$0xf]
        %v885 = vld [vmem:[%s3 + $0xc] sm:$0xf]
        %v886 = vld [vmem:[%s3 + $0x10] sm:$0xf]
        %v887 = vld [vmem:[%s3 + $0x14] sm:$0xf]
        %v888 = vld [vmem:[%s3 + $0x18] sm:$0xf]
        %v889 = vld [vmem:[%s3 + $0x1c] sm:$0xf]
        %v890 = vld [vmem:[%s3 + $0x20] sm:$0xf]
        %v891 = vld [vmem:[%s3 + $0x24] sm:$0xf]
        %v892 = vld [vmem:[%s3 + $0x28] sm:$0xf]
        %v893 = vld [vmem:[%s3 + $0x2c] sm:$0xf]
        %v894 = vld [vmem:[%s3 + $0x30] sm:$0xf]
        %v895 = vld [vmem:[%s3 + $0x34] sm:$0xf]
        %v896 = vld [vmem:[%s3 + $0x38] sm:$0xf]
        %v897 = vld [vmem:[%s3 + $0x3c] sm:$0xf]
        %v898 = vld [vmem:[%s4] sm:$0x1]
        %v900 = vlaneseq
        %v901 = vshrl.u32 %v900, 7
        %v902 = vsub.s32 0, %v901
        %v903 = vrot.slane %v898, %v902
        %v921 = vunpack.c.l.b16 %v882
        %v922 = vunpack.c.l.b16 %v883
        %v923 = vunpack.c.l.b16 %v884
        %v924 = vunpack.c.l.b16 %v885
        %v925 = vunpack.c.l.b16 %v886
        %v926 = vunpack.c.l.b16 %v887
        %v927 = vunpack.c.l.b16 %v888
        %v928 = vunpack.c.l.b16 %v889
        %v929 = vunpack.c.l.b16 %v890
        %v930 = vunpack.c.l.b16 %v891
        %v931 = vunpack.c.l.b16 %v892
        %v932 = vunpack.c.l.b16 %v893
        %v933 = vunpack.c.l.b16 %v894
        %v934 = vunpack.c.l.b16 %v895
        %v935 = vunpack.c.l.b16 %v896
        %v936 = vunpack.c.l.b16 %v897
        %v937 = vpack.c.b16 %v922, %v921
        %v938 = vpack.c.b16 %v924, %v923
        %v939 = vpack.c.b16 %v926, %v925
        %v940 = vpack.c.b16 %v928, %v927
        %v941 = vpack.c.b16 %v930, %v929
        %v942 = vpack.c.b16 %v932, %v931
        %v943 = vpack.c.b16 %v934, %v933
        %v944 = vpack.c.b16 %v936, %v935
        %953 = vmatprep.subr.bf16.mxu0 0
        %954 = vmatpush1.bf16.msra.mxu0 %v944
        %955 = vmatprep.subr.bf16.mxu0 0
        %956 = vmatpush1.bf16.msra.mxu0 %v943
        %957 = vmatprep.subr.bf16.mxu0 0
        %958 = vmatpush1.bf16.msra.mxu0 %v942
        %959 = vmatprep.subr.bf16.mxu0 0
        %960 = vmatpush1.bf16.msra.mxu0 %v941
        %961 = vmatprep.subr.bf16.mxu0 0
        %962 = vmatpush1.bf16.msra.mxu0 %v940
        %963 = vmatprep.subr.bf16.mxu0 0
        %964 = vmatpush1.bf16.msra.mxu0 %v939
        %965 = vmatprep.subr.bf16.mxu0 0
        %966 = vmatpush1.bf16.msra.mxu0 %v938
        %967 = vmatprep.subr.bf16.mxu0 0
        %968 = vmatpush1.bf16.msra.mxu0 %v937
        %969 = vmatprep.subr.bf16.mxu0 0
        %970 = vmatpush2.bf16.msra.mxu0 0
        %971 = vmatprep.subr.bf16.mxu0 0
        %972 = vmatpush2.bf16.msra.mxu0 0
        %973 = vmatprep.subr.bf16.mxu0 0
        %974 = vmatpush2.bf16.msra.mxu0 0
        %975 = vmatprep.subr.bf16.mxu0 0
        %976 = vmatpush2.bf16.msra.mxu0 0
        %977 = vmatprep.subr.bf16.mxu0 0
        %978 = vmatpush2.bf16.msra.mxu0 0
        %979 = vmatprep.subr.bf16.mxu0 0
        %980 = vmatpush2.bf16.msra.mxu0 0
        %981 = vmatprep.subr.bf16.mxu0 0
        %982 = vmatpush2.bf16.msra.mxu0 0
        %983 = vmatprep.subr.bf16.mxu0 0
        %984 = vmatpush2.bf16.msra.mxu0 0
        %985 = vmatprep.mubr.bf16.mxu0 0
        %986 = vmatmul.mubr.bf16.gmra.mxu0 %v850
        %v987 = vpop.f32.mrf.mxu0
        %v988 = vadd.f32 %v903, %v987
        %v989 = vpop.f32.mrf.mxu0
        %v990 = vpop.f32.mrf.mxu0
        %v991 = vadd.f32 %v903, %v990
        %v992 = vpop.f32.mrf.mxu0
        %993 = vmatprep.mubr.bf16.mxu0 0
        %994 = vmatmul.mubr.bf16.gmra.mxu0 %v851
        %v995 = vpop.f32.mrf.mxu0
        %v996 = vadd.f32 %v903, %v995
        %v997 = vpop.f32.mrf.mxu0
        %v998 = vpop.f32.mrf.mxu0
        %v999 = vadd.f32 %v903, %v998
        %v1000 = vpop.f32.mrf.mxu0
        %1001 = vmatprep.mubr.bf16.mxu0 0
        %1002 = vmatmul.mubr.bf16.gmra.mxu0 %v852
        %v1003 = vpop.f32.mrf.mxu0
        %v1004 = vadd.f32 %v903, %v1003
        %v1005 = vpop.f32.mrf.mxu0
        %v1006 = vpop.f32.mrf.mxu0
        %v1007 = vadd.f32 %v903, %v1006
        %v1008 = vpop.f32.mrf.mxu0
        %1009 = vmatprep.mubr.bf16.mxu0 0
        %1010 = vmatmul.mubr.bf16.gmra.mxu0 %v853
        %v1011 = vpop.f32.mrf.mxu0
        %v1012 = vadd.f32 %v903, %v1011
        %v1013 = vpop.f32.mrf.mxu0
        %v1014 = vpop.f32.mrf.mxu0
        %v1015 = vadd.f32 %v903, %v1014
        %v1016 = vpop.f32.mrf.mxu0
        %1017 = vmatprep.mubr.bf16.mxu0 0
        %1018 = vmatmul.mubr.bf16.gmra.mxu0 %v854
        %v1019 = vpop.f32.mrf.mxu0
        %v1020 = vadd.f32 %v903, %v1019
        %v1021 = vpop.f32.mrf.mxu0
        %v1022 = vpop.f32.mrf.mxu0
        %v1023 = vadd.f32 %v903, %v1022
        %v1024 = vpop.f32.mrf.mxu0
        %1025 = vmatprep.mubr.bf16.mxu0 0
        %1026 = vmatmul.mubr.bf16.gmra.mxu0 %v855
        %v1027 = vpop.f32.mrf.mxu0
        %v1028 = vadd.f32 %v903, %v1027
        %v1029 = vpop.f32.mrf.mxu0
        %v1030 = vpop.f32.mrf.mxu0
        %v1031 = vadd.f32 %v903, %v1030
        %v1032 = vpop.f32.mrf.mxu0
        %1033 = vmatprep.mubr.bf16.mxu0 0
        %1034 = vmatmul.mubr.bf16.gmra.mxu0 %v856
        %v1035 = vpop.f32.mrf.mxu0
        %v1036 = vadd.f32 %v903, %v1035
        %v1037 = vpop.f32.mrf.mxu0
        %v1038 = vpop.f32.mrf.mxu0
        %v1039 = vadd.f32 %v903, %v1038
        %v1040 = vpop.f32.mrf.mxu0
        %1041 = vmatprep.mubr.bf16.mxu0 0
        %1042 = vmatmul.mubr.bf16.gmra.mxu0 %v857
        %v1043 = vpop.f32.mrf.mxu0
        %v1044 = vadd.f32 %v903, %v1043
        %v1045 = vpop.f32.mrf.mxu0
        %v1046 = vpop.f32.mrf.mxu0
        %v1047 = vadd.f32 %v903, %v1046
        %v1048 = vpop.f32.mrf.mxu0
        %1049 = vmatprep.mubr.bf16.mxu0 0
        %1050 = vmatmul.mubr.bf16.gmra.mxu0 %v858
        %v1051 = vpop.f32.mrf.mxu0
        %v1052 = vadd.f32 %v903, %v1051
        %v1053 = vpop.f32.mrf.mxu0
        %v1054 = vpop.f32.mrf.mxu0
        %v1055 = vadd.f32 %v903, %v1054
        %v1056 = vpop.f32.mrf.mxu0
        %1057 = vmatprep.mubr.bf16.mxu0 0
        %1058 = vmatmul.mubr.bf16.gmra.mxu0 %v859
        %v1059 = vpop.f32.mrf.mxu0
        %v1060 = vadd.f32 %v903, %v1059
        %v1061 = vpop.f32.mrf.mxu0
        %v1062 = vpop.f32.mrf.mxu0
        %v1063 = vadd.f32 %v903, %v1062
        %v1064 = vpop.f32.mrf.mxu0
        %1065 = vmatprep.mubr.bf16.mxu0 0
        %1066 = vmatmul.mubr.bf16.gmra.mxu0 %v860
        %v1067 = vpop.f32.mrf.mxu0
        %v1068 = vadd.f32 %v903, %v1067
        %v1069 = vpop.f32.mrf.mxu0
        %v1070 = vpop.f32.mrf.mxu0
        %v1071 = vadd.f32 %v903, %v1070
        %v1072 = vpop.f32.mrf.mxu0
        %1073 = vmatprep.mubr.bf16.mxu0 0
        %1074 = vmatmul.mubr.bf16.gmra.mxu0 %v861
        %v1075 = vpop.f32.mrf.mxu0
        %v1076 = vadd.f32 %v903, %v1075
        %v1077 = vpop.f32.mrf.mxu0
        %v1078 = vpop.f32.mrf.mxu0
        %v1079 = vadd.f32 %v903, %v1078
        %v1080 = vpop.f32.mrf.mxu0
        %1081 = vmatprep.mubr.bf16.mxu0 0
        %1082 = vmatmul.mubr.bf16.gmra.mxu0 %v862
        %v1083 = vpop.f32.mrf.mxu0
        %v1084 = vadd.f32 %v903, %v1083
        %v1085 = vpop.f32.mrf.mxu0
        %v1086 = vpop.f32.mrf.mxu0
        %v1087 = vadd.f32 %v903, %v1086
        %v1088 = vpop.f32.mrf.mxu0
        %1089 = vmatprep.mubr.bf16.mxu0 0
        %1090 = vmatmul.mubr.bf16.gmra.mxu0 %v863
        %v1091 = vpop.f32.mrf.mxu0
        %v1092 = vadd.f32 %v903, %v1091
        %v1093 = vpop.f32.mrf.mxu0
        %v1094 = vpop.f32.mrf.mxu0
        %v1095 = vadd.f32 %v903, %v1094
        %v1096 = vpop.f32.mrf.mxu0
        %1097 = vmatprep.mubr.bf16.mxu0 0
        %1098 = vmatmul.mubr.bf16.gmra.mxu0 %v864
        %v1099 = vpop.f32.mrf.mxu0
        %v1100 = vadd.f32 %v903, %v1099
        %v1101 = vpop.f32.mrf.mxu0
        %v1102 = vpop.f32.mrf.mxu0
        %v1103 = vadd.f32 %v903, %v1102
        %v1104 = vpop.f32.mrf.mxu0
        %1105 = vmatprep.mubr.bf16.mxu0 0
        %1106 = vmatmul.mubr.bf16.gmra.mxu0 %v865
        %v1107 = vpop.f32.mrf.mxu0
        %v1108 = vadd.f32 %v903, %v1107
        %v1109 = vpop.f32.mrf.mxu0
        %v1110 = vpop.f32.mrf.mxu0
        %v1111 = vadd.f32 %v903, %v1110
        %v1112 = vpop.f32.mrf.mxu0
        %1113 = vmatprep.mubr.bf16.mxu0 0
        %1114 = vmatmul.mubr.bf16.gmra.mxu0 %v866
        %v1115 = vpop.f32.mrf.mxu0
        %v1116 = vadd.f32 %v903, %v1115
        %v1117 = vpop.f32.mrf.mxu0
        %v1118 = vpop.f32.mrf.mxu0
        %v1119 = vadd.f32 %v903, %v1118
        %v1120 = vpop.f32.mrf.mxu0
        %1121 = vmatprep.mubr.bf16.mxu0 0
        %1122 = vmatmul.mubr.bf16.gmra.mxu0 %v867
        %v1123 = vpop.f32.mrf.mxu0
        %v1124 = vadd.f32 %v903, %v1123
        %v1125 = vpop.f32.mrf.mxu0
        %v1126 = vpop.f32.mrf.mxu0
        %v1127 = vadd.f32 %v903, %v1126
        %v1128 = vpop.f32.mrf.mxu0
        %1129 = vmatprep.mubr.bf16.mxu0 0
        %1130 = vmatmul.mubr.bf16.gmra.mxu0 %v868
        %v1131 = vpop.f32.mrf.mxu0
        %v1132 = vadd.f32 %v903, %v1131
        %v1133 = vpop.f32.mrf.mxu0
        %v1134 = vpop.f32.mrf.mxu0
        %v1135 = vadd.f32 %v903, %v1134
        %v1136 = vpop.f32.mrf.mxu0
        %1137 = vmatprep.mubr.bf16.mxu0 0
        %1138 = vmatmul.mubr.bf16.gmra.mxu0 %v869
        %v1139 = vpop.f32.mrf.mxu0
        %v1140 = vadd.f32 %v903, %v1139
        %v1141 = vpop.f32.mrf.mxu0
        %v1142 = vpop.f32.mrf.mxu0
        %v1143 = vadd.f32 %v903, %v1142
        %v1144 = vpop.f32.mrf.mxu0
        %1145 = vmatprep.mubr.bf16.mxu0 0
        %1146 = vmatmul.mubr.bf16.gmra.mxu0 %v870
        %v1147 = vpop.f32.mrf.mxu0
        %v1148 = vadd.f32 %v903, %v1147
        %v1149 = vpop.f32.mrf.mxu0
        %v1150 = vpop.f32.mrf.mxu0
        %v1151 = vadd.f32 %v903, %v1150
        %v1152 = vpop.f32.mrf.mxu0
        %1153 = vmatprep.mubr.bf16.mxu0 0
        %1154 = vmatmul.mubr.bf16.gmra.mxu0 %v871
        %v1155 = vpop.f32.mrf.mxu0
        %v1156 = vadd.f32 %v903, %v1155
        %v1157 = vpop.f32.mrf.mxu0
        %v1158 = vpop.f32.mrf.mxu0
        %v1159 = vadd.f32 %v903, %v1158
        %v1160 = vpop.f32.mrf.mxu0
        %1161 = vmatprep.mubr.bf16.mxu0 0
        %1162 = vmatmul.mubr.bf16.gmra.mxu0 %v872
        %v1163 = vpop.f32.mrf.mxu0
        %v1164 = vadd.f32 %v903, %v1163
        %v1165 = vpop.f32.mrf.mxu0
        %v1166 = vpop.f32.mrf.mxu0
        %v1167 = vadd.f32 %v903, %v1166
        %v1168 = vpop.f32.mrf.mxu0
        %1169 = vmatprep.mubr.bf16.mxu0 0
        %1170 = vmatmul.mubr.bf16.gmra.mxu0 %v873
        %v1171 = vpop.f32.mrf.mxu0
        %v1172 = vadd.f32 %v903, %v1171
        %v1173 = vpop.f32.mrf.mxu0
        %v1174 = vpop.f32.mrf.mxu0
        %v1175 = vadd.f32 %v903, %v1174
        %v1176 = vpop.f32.mrf.mxu0
        %1177 = vmatprep.mubr.bf16.mxu0 0
        %1178 = vmatmul.mubr.bf16.gmra.mxu0 %v874
        %v1179 = vpop.f32.mrf.mxu0
        %v1180 = vadd.f32 %v903, %v1179
        %v1181 = vpop.f32.mrf.mxu0
        %v1182 = vpop.f32.mrf.mxu0
        %v1183 = vadd.f32 %v903, %v1182
        %v1184 = vpop.f32.mrf.mxu0
        %1185 = vmatprep.mubr.bf16.mxu0 0
        %1186 = vmatmul.mubr.bf16.gmra.mxu0 %v875
        %v1187 = vpop.f32.mrf.mxu0
        %v1188 = vadd.f32 %v903, %v1187
        %v1189 = vpop.f32.mrf.mxu0
        %v1190 = vpop.f32.mrf.mxu0
        %v1191 = vadd.f32 %v903, %v1190
        %v1192 = vpop.f32.mrf.mxu0
        %1193 = vmatprep.mubr.bf16.mxu0 0
        %1194 = vmatmul.mubr.bf16.gmra.mxu0 %v876
        %v1195 = vpop.f32.mrf.mxu0
        %v1196 = vadd.f32 %v903, %v1195
        %v1197 = vpop.f32.mrf.mxu0
        %v1198 = vpop.f32.mrf.mxu0
        %v1199 = vadd.f32 %v903, %v1198
        %v1200 = vpop.f32.mrf.mxu0
        %1201 = vmatprep.mubr.bf16.mxu0 0
        %1202 = vmatmul.mubr.bf16.gmra.mxu0 %v877
        %v1203 = vpop.f32.mrf.mxu0
        %v1204 = vadd.f32 %v903, %v1203
        %v1205 = vpop.f32.mrf.mxu0
        %v1206 = vpop.f32.mrf.mxu0
        %v1207 = vadd.f32 %v903, %v1206
        %v1208 = vpop.f32.mrf.mxu0
        %1209 = vmatprep.mubr.bf16.mxu0 0
        %1210 = vmatmul.mubr.bf16.gmra.mxu0 %v878
        %v1211 = vpop.f32.mrf.mxu0
        %v1212 = vadd.f32 %v903, %v1211
        %v1213 = vpop.f32.mrf.mxu0
        %v1214 = vpop.f32.mrf.mxu0
        %v1215 = vadd.f32 %v903, %v1214
        %v1216 = vpop.f32.mrf.mxu0
        %1217 = vmatprep.mubr.bf16.mxu0 0
        %1218 = vmatmul.mubr.bf16.gmra.mxu0 %v879
        %v1219 = vpop.f32.mrf.mxu0
        %v1220 = vadd.f32 %v903, %v1219
        %v1221 = vpop.f32.mrf.mxu0
        %v1222 = vpop.f32.mrf.mxu0
        %v1223 = vadd.f32 %v903, %v1222
        %v1224 = vpop.f32.mrf.mxu0
        %1225 = vmatprep.mubr.bf16.mxu0 0
        %1226 = vmatmul.mubr.bf16.gmra.mxu0 %v880
        %v1227 = vpop.f32.mrf.mxu0
        %v1228 = vadd.f32 %v903, %v1227
        %v1229 = vpop.f32.mrf.mxu0
        %v1230 = vpop.f32.mrf.mxu0
        %v1231 = vadd.f32 %v903, %v1230
        %v1232 = vpop.f32.mrf.mxu0
        %1233 = vmatprep.mubr.bf16.mxu0 0
        %1234 = vmatmul.mubr.bf16.gmra.mxu0 %v881
        %v1235 = vpop.f32.mrf.mxu0
        %v1236 = vadd.f32 %v903, %v1235
        %v1237 = vpop.f32.mrf.mxu0
        %v1238 = vpop.f32.mrf.mxu0
        %v1239 = vadd.f32 %v903, %v1238
        %v1240 = vpop.f32.mrf.mxu0
        %1241 = vdwg.mxu0
        %v1242 = vmax.f32 %v988, 0.0
        %v1243 = vmax.f32 %v991, 0.0
        %v1244 = vmax.f32 %v996, 0.0
        %v1245 = vmax.f32 %v999, 0.0
        %v1246 = vmax.f32 %v1004, 0.0
        %v1247 = vmax.f32 %v1007, 0.0
        %v1248 = vmax.f32 %v1012, 0.0
        %v1249 = vmax.f32 %v1015, 0.0
        %v1250 = vmax.f32 %v1020, 0.0
        %v1251 = vmax.f32 %v1023, 0.0
        %v1252 = vmax.f32 %v1028, 0.0
        %v1253 = vmax.f32 %v1031, 0.0
        %v1254 = vmax.f32 %v1036, 0.0
        %v1255 = vmax.f32 %v1039, 0.0
        %v1256 = vmax.f32 %v1044, 0.0
        %v1257 = vmax.f32 %v1047, 0.0
        %v1258 = vmax.f32 %v1052, 0.0
        %v1259 = vmax.f32 %v1055, 0.0
        %v1260 = vmax.f32 %v1060, 0.0
        %v1261 = vmax.f32 %v1063, 0.0
        %v1262 = vmax.f32 %v1068, 0.0
        %v1263 = vmax.f32 %v1071, 0.0
        %v1264 = vmax.f32 %v1076, 0.0
        %v1265 = vmax.f32 %v1079, 0.0
        %v1266 = vmax.f32 %v1084, 0.0
        %v1267 = vmax.f32 %v1087, 0.0
        %v1268 = vmax.f32 %v1092, 0.0
        %v1269 = vmax.f32 %v1095, 0.0
        %v1270 = vmax.f32 %v1100, 0.0
        %v1271 = vmax.f32 %v1103, 0.0
        %v1272 = vmax.f32 %v1108, 0.0
        %v1273 = vmax.f32 %v1111, 0.0
        %v1274 = vmax.f32 %v1116, 0.0
        %v1275 = vmax.f32 %v1119, 0.0
        %v1276 = vmax.f32 %v1124, 0.0
        %v1277 = vmax.f32 %v1127, 0.0
        %v1278 = vmax.f32 %v1132, 0.0
        %v1279 = vmax.f32 %v1135, 0.0
        %v1280 = vmax.f32 %v1140, 0.0
        %v1281 = vmax.f32 %v1143, 0.0
        %v1282 = vmax.f32 %v1148, 0.0
        %v1283 = vmax.f32 %v1151, 0.0
        %v1284 = vmax.f32 %v1156, 0.0
        %v1285 = vmax.f32 %v1159, 0.0
        %v1286 = vmax.f32 %v1164, 0.0
        %v1287 = vmax.f32 %v1167, 0.0
        %v1288 = vmax.f32 %v1172, 0.0
        %v1289 = vmax.f32 %v1175, 0.0
        %v1290 = vmax.f32 %v1180, 0.0
        %v1291 = vmax.f32 %v1183, 0.0
        %v1292 = vmax.f32 %v1188, 0.0
        %v1293 = vmax.f32 %v1191, 0.0
        %v1294 = vmax.f32 %v1196, 0.0
        %v1295 = vmax.f32 %v1199, 0.0
        %v1296 = vmax.f32 %v1204, 0.0
        %v1297 = vmax.f32 %v1207, 0.0
        %v1298 = vmax.f32 %v1212, 0.0
        %v1299 = vmax.f32 %v1215, 0.0
        %v1300 = vmax.f32 %v1220, 0.0
        %v1301 = vmax.f32 %v1223, 0.0
        %v1302 = vmax.f32 %v1228, 0.0
        %v1303 = vmax.f32 %v1231, 0.0
        %v1304 = vmax.f32 %v1236, 0.0
        %v1305 = vmax.f32 %v1239, 0.0
        %v1306 = vpack.c.bf16 %v1243, %v1242
        %v1307 = vpack.c.bf16 %v1245, %v1244
        %v1308 = vpack.c.bf16 %v1247, %v1246
        %v1309 = vpack.c.bf16 %v1249, %v1248
        %v1310 = vpack.c.bf16 %v1251, %v1250
        %v1311 = vpack.c.bf16 %v1253, %v1252
        %v1312 = vpack.c.bf16 %v1255, %v1254
        %v1313 = vpack.c.bf16 %v1257, %v1256
        %v1314 = vpack.c.bf16 %v1259, %v1258
        %v1315 = vpack.c.bf16 %v1261, %v1260
        %v1316 = vpack.c.bf16 %v1263, %v1262
        %v1317 = vpack.c.bf16 %v1265, %v1264
        %v1318 = vpack.c.bf16 %v1267, %v1266
        %v1319 = vpack.c.bf16 %v1269, %v1268
        %v1320 = vpack.c.bf16 %v1271, %v1270
        %v1321 = vpack.c.bf16 %v1273, %v1272
        %v1322 = vpack.c.bf16 %v1275, %v1274
        %v1323 = vpack.c.bf16 %v1277, %v1276
        %v1324 = vpack.c.bf16 %v1279, %v1278
        %v1325 = vpack.c.bf16 %v1281, %v1280
        %v1326 = vpack.c.bf16 %v1283, %v1282
        %v1327 = vpack.c.bf16 %v1285, %v1284
        %v1328 = vpack.c.bf16 %v1287, %v1286
        %v1329 = vpack.c.bf16 %v1289, %v1288
        %v1330 = vpack.c.bf16 %v1291, %v1290
        %v1331 = vpack.c.bf16 %v1293, %v1292
        %v1332 = vpack.c.bf16 %v1295, %v1294
        %v1333 = vpack.c.bf16 %v1297, %v1296
        %v1334 = vpack.c.bf16 %v1299, %v1298
        %v1335 = vpack.c.bf16 %v1301, %v1300
        %v1336 = vpack.c.bf16 %v1303, %v1302
        %v1337 = vpack.c.bf16 %v1305, %v1304
        %v1338 = vld [vmem:[%s5] sm:$0xf]
        %v1339 = vld [vmem:[%s5 + $0x4] sm:$0xf]
        %v1340 = vld [vmem:[%s5 + $0x8] sm:$0xf]
        %v1341 = vld [vmem:[%s5 + $0xc] sm:$0xf]
        %v1342 = vld [vmem:[%s5 + $0x10] sm:$0xf]
        %v1343 = vld [vmem:[%s5 + $0x14] sm:$0xf]
        %v1344 = vld [vmem:[%s5 + $0x18] sm:$0xf]
        %v1345 = vld [vmem:[%s5 + $0x1c] sm:$0xf]
        %v1346 = vld [vmem:[%s5 + $0x20] sm:$0xf]
        %v1347 = vld [vmem:[%s5 + $0x24] sm:$0xf]
        %v1348 = vld [vmem:[%s5 + $0x28] sm:$0xf]
        %v1349 = vld [vmem:[%s5 + $0x2c] sm:$0xf]
        %v1350 = vld [vmem:[%s5 + $0x30] sm:$0xf]
        %v1351 = vld [vmem:[%s5 + $0x34] sm:$0xf]
        %v1352 = vld [vmem:[%s5 + $0x38] sm:$0xf]
        %v1353 = vld [vmem:[%s5 + $0x3c] sm:$0xf]
        %v1354 = vld [vmem:[%s6] sm:$0x1]
        %v1356 = vlaneseq
        %v1357 = vshrl.u32 %v1356, 7
        %v1358 = vsub.s32 0, %v1357
        %v1359 = vrot.slane %v1354, %v1358
        %v1377 = vunpack.c.l.b16 %v1338
        %v1378 = vunpack.c.l.b16 %v1339
        %v1379 = vunpack.c.l.b16 %v1340
        %v1380 = vunpack.c.l.b16 %v1341
        %v1381 = vunpack.c.l.b16 %v1342
        %v1382 = vunpack.c.l.b16 %v1343
        %v1383 = vunpack.c.l.b16 %v1344
        %v1384 = vunpack.c.l.b16 %v1345
        %v1385 = vunpack.c.l.b16 %v1346
        %v1386 = vunpack.c.l.b16 %v1347
        %v1387 = vunpack.c.l.b16 %v1348
        %v1388 = vunpack.c.l.b16 %v1349
        %v1389 = vunpack.c.l.b16 %v1350
        %v1390 = vunpack.c.l.b16 %v1351
        %v1391 = vunpack.c.l.b16 %v1352
        %v1392 = vunpack.c.l.b16 %v1353
        %v1393 = vpack.c.b16 %v1378, %v1377
        %v1394 = vpack.c.b16 %v1380, %v1379
        %v1395 = vpack.c.b16 %v1382, %v1381
        %v1396 = vpack.c.b16 %v1384, %v1383
        %v1397 = vpack.c.b16 %v1386, %v1385
        %v1398 = vpack.c.b16 %v1388, %v1387
        %v1399 = vpack.c.b16 %v1390, %v1389
        %v1400 = vpack.c.b16 %v1392, %v1391
        %1409 = vmatprep.subr.bf16.mxu0 0
        %1410 = vmatpush1.bf16.msra.mxu0 %v1400
        %1411 = vmatprep.subr.bf16.mxu0 0
        %1412 = vmatpush1.bf16.msra.mxu0 %v1399
        %1413 = vmatprep.subr.bf16.mxu0 0
        %1414 = vmatpush1.bf16.msra.mxu0 %v1398
        %1415 = vmatprep.subr.bf16.mxu0 0
        %1416 = vmatpush1.bf16.msra.mxu0 %v1397
        %1417 = vmatprep.subr.bf16.mxu0 0
        %1418 = vmatpush1.bf16.msra.mxu0 %v1396
        %1419 = vmatprep.subr.bf16.mxu0 0
        %1420 = vmatpush1.bf16.msra.mxu0 %v1395
        %1421 = vmatprep.subr.bf16.mxu0 0
        %1422 = vmatpush1.bf16.msra.mxu0 %v1394
        %1423 = vmatprep.subr.bf16.mxu0 0
        %1424 = vmatpush1.bf16.msra.mxu0 %v1393
        %1425 = vmatprep.subr.bf16.mxu0 0
        %1426 = vmatpush2.bf16.msra.mxu0 0
        %1427 = vmatprep.subr.bf16.mxu0 0
        %1428 = vmatpush2.bf16.msra.mxu0 0
        %1429 = vmatprep.subr.bf16.mxu0 0
        %1430 = vmatpush2.bf16.msra.mxu0 0
        %1431 = vmatprep.subr.bf16.mxu0 0
        %1432 = vmatpush2.bf16.msra.mxu0 0
        %1433 = vmatprep.subr.bf16.mxu0 0
        %1434 = vmatpush2.bf16.msra.mxu0 0
        %1435 = vmatprep.subr.bf16.mxu0 0
        %1436 = vmatpush2.bf16.msra.mxu0 0
        %1437 = vmatprep.subr.bf16.mxu0 0
        %1438 = vmatpush2.bf16.msra.mxu0 0
        %1439 = vmatprep.subr.bf16.mxu0 0
        %1440 = vmatpush2.bf16.msra.mxu0 0
        %1441 = vmatprep.mubr.bf16.mxu0 0
        %1442 = vmatmul.mubr.bf16.gmra.mxu0 %v1306
        %v1443 = vpop.f32.mrf.mxu0
        %v1444 = vadd.f32 %v1359, %v1443
        %v1445 = vpop.f32.mrf.mxu0
        %v1446 = vpop.f32.mrf.mxu0
        %v1447 = vadd.f32 %v1359, %v1446
        %v1448 = vpop.f32.mrf.mxu0
        %1449 = vmatprep.mubr.bf16.mxu0 0
        %1450 = vmatmul.mubr.bf16.gmra.mxu0 %v1307
        %v1451 = vpop.f32.mrf.mxu0
        %v1452 = vadd.f32 %v1359, %v1451
        %v1453 = vpop.f32.mrf.mxu0
        %v1454 = vpop.f32.mrf.mxu0
        %v1455 = vadd.f32 %v1359, %v1454
        %v1456 = vpop.f32.mrf.mxu0
        %1457 = vmatprep.mubr.bf16.mxu0 0
        %1458 = vmatmul.mubr.bf16.gmra.mxu0 %v1308
        %v1459 = vpop.f32.mrf.mxu0
        %v1460 = vadd.f32 %v1359, %v1459
        %v1461 = vpop.f32.mrf.mxu0
        %v1462 = vpop.f32.mrf.mxu0
        %v1463 = vadd.f32 %v1359, %v1462
        %v1464 = vpop.f32.mrf.mxu0
        %1465 = vmatprep.mubr.bf16.mxu0 0
        %1466 = vmatmul.mubr.bf16.gmra.mxu0 %v1309
        %v1467 = vpop.f32.mrf.mxu0
        %v1468 = vadd.f32 %v1359, %v1467
        %v1469 = vpop.f32.mrf.mxu0
        %v1470 = vpop.f32.mrf.mxu0
        %v1471 = vadd.f32 %v1359, %v1470
        %v1472 = vpop.f32.mrf.mxu0
        %1473 = vmatprep.mubr.bf16.mxu0 0
        %1474 = vmatmul.mubr.bf16.gmra.mxu0 %v1310
        %v1475 = vpop.f32.mrf.mxu0
        %v1476 = vadd.f32 %v1359, %v1475
        %v1477 = vpop.f32.mrf.mxu0
        %v1478 = vpop.f32.mrf.mxu0
        %v1479 = vadd.f32 %v1359, %v1478
        %v1480 = vpop.f32.mrf.mxu0
        %1481 = vmatprep.mubr.bf16.mxu0 0
        %1482 = vmatmul.mubr.bf16.gmra.mxu0 %v1311
        %v1483 = vpop.f32.mrf.mxu0
        %v1484 = vadd.f32 %v1359, %v1483
        %v1485 = vpop.f32.mrf.mxu0
        %v1486 = vpop.f32.mrf.mxu0
        %v1487 = vadd.f32 %v1359, %v1486
        %v1488 = vpop.f32.mrf.mxu0
        %1489 = vmatprep.mubr.bf16.mxu0 0
        %1490 = vmatmul.mubr.bf16.gmra.mxu0 %v1312
        %v1491 = vpop.f32.mrf.mxu0
        %v1492 = vadd.f32 %v1359, %v1491
        %v1493 = vpop.f32.mrf.mxu0
        %v1494 = vpop.f32.mrf.mxu0
        %v1495 = vadd.f32 %v1359, %v1494
        %v1496 = vpop.f32.mrf.mxu0
        %1497 = vmatprep.mubr.bf16.mxu0 0
        %1498 = vmatmul.mubr.bf16.gmra.mxu0 %v1313
        %v1499 = vpop.f32.mrf.mxu0
        %v1500 = vadd.f32 %v1359, %v1499
        %v1501 = vpop.f32.mrf.mxu0
        %v1502 = vpop.f32.mrf.mxu0
        %v1503 = vadd.f32 %v1359, %v1502
        %v1504 = vpop.f32.mrf.mxu0
        %1505 = vmatprep.mubr.bf16.mxu0 0
        %1506 = vmatmul.mubr.bf16.gmra.mxu0 %v1314
        %v1507 = vpop.f32.mrf.mxu0
        %v1508 = vadd.f32 %v1359, %v1507
        %v1509 = vpop.f32.mrf.mxu0
        %v1510 = vpop.f32.mrf.mxu0
        %v1511 = vadd.f32 %v1359, %v1510
        %v1512 = vpop.f32.mrf.mxu0
        %1513 = vmatprep.mubr.bf16.mxu0 0
        %1514 = vmatmul.mubr.bf16.gmra.mxu0 %v1315
        %v1515 = vpop.f32.mrf.mxu0
        %v1516 = vadd.f32 %v1359, %v1515
        %v1517 = vpop.f32.mrf.mxu0
        %v1518 = vpop.f32.mrf.mxu0
        %v1519 = vadd.f32 %v1359, %v1518
        %v1520 = vpop.f32.mrf.mxu0
        %1521 = vmatprep.mubr.bf16.mxu0 0
        %1522 = vmatmul.mubr.bf16.gmra.mxu0 %v1316
        %v1523 = vpop.f32.mrf.mxu0
        %v1524 = vadd.f32 %v1359, %v1523
        %v1525 = vpop.f32.mrf.mxu0
        %v1526 = vpop.f32.mrf.mxu0
        %v1527 = vadd.f32 %v1359, %v1526
        %v1528 = vpop.f32.mrf.mxu0
        %1529 = vmatprep.mubr.bf16.mxu0 0
        %1530 = vmatmul.mubr.bf16.gmra.mxu0 %v1317
        %v1531 = vpop.f32.mrf.mxu0
        %v1532 = vadd.f32 %v1359, %v1531
        %v1533 = vpop.f32.mrf.mxu0
        %v1534 = vpop.f32.mrf.mxu0
        %v1535 = vadd.f32 %v1359, %v1534
        %v1536 = vpop.f32.mrf.mxu0
        %1537 = vmatprep.mubr.bf16.mxu0 0
        %1538 = vmatmul.mubr.bf16.gmra.mxu0 %v1318
        %v1539 = vpop.f32.mrf.mxu0
        %v1540 = vadd.f32 %v1359, %v1539
        %v1541 = vpop.f32.mrf.mxu0
        %v1542 = vpop.f32.mrf.mxu0
        %v1543 = vadd.f32 %v1359, %v1542
        %v1544 = vpop.f32.mrf.mxu0
        %1545 = vmatprep.mubr.bf16.mxu0 0
        %1546 = vmatmul.mubr.bf16.gmra.mxu0 %v1319
        %v1547 = vpop.f32.mrf.mxu0
        %v1548 = vadd.f32 %v1359, %v1547
        %v1549 = vpop.f32.mrf.mxu0
        %v1550 = vpop.f32.mrf.mxu0
        %v1551 = vadd.f32 %v1359, %v1550
        %v1552 = vpop.f32.mrf.mxu0
        %1553 = vmatprep.mubr.bf16.mxu0 0
        %1554 = vmatmul.mubr.bf16.gmra.mxu0 %v1320
        %v1555 = vpop.f32.mrf.mxu0
        %v1556 = vadd.f32 %v1359, %v1555
        %v1557 = vpop.f32.mrf.mxu0
        %v1558 = vpop.f32.mrf.mxu0
        %v1559 = vadd.f32 %v1359, %v1558
        %v1560 = vpop.f32.mrf.mxu0
        %1561 = vmatprep.mubr.bf16.mxu0 0
        %1562 = vmatmul.mubr.bf16.gmra.mxu0 %v1321
        %v1563 = vpop.f32.mrf.mxu0
        %v1564 = vadd.f32 %v1359, %v1563
        %v1565 = vpop.f32.mrf.mxu0
        %v1566 = vpop.f32.mrf.mxu0
        %v1567 = vadd.f32 %v1359, %v1566
        %v1568 = vpop.f32.mrf.mxu0
        %1569 = vmatprep.mubr.bf16.mxu0 0
        %1570 = vmatmul.mubr.bf16.gmra.mxu0 %v1322
        %v1571 = vpop.f32.mrf.mxu0
        %v1572 = vadd.f32 %v1359, %v1571
        %v1573 = vpop.f32.mrf.mxu0
        %v1574 = vpop.f32.mrf.mxu0
        %v1575 = vadd.f32 %v1359, %v1574
        %v1576 = vpop.f32.mrf.mxu0
        %1577 = vmatprep.mubr.bf16.mxu0 0
        %1578 = vmatmul.mubr.bf16.gmra.mxu0 %v1323
        %v1579 = vpop.f32.mrf.mxu0
        %v1580 = vadd.f32 %v1359, %v1579
        %v1581 = vpop.f32.mrf.mxu0
        %v1582 = vpop.f32.mrf.mxu0
        %v1583 = vadd.f32 %v1359, %v1582
        %v1584 = vpop.f32.mrf.mxu0
        %1585 = vmatprep.mubr.bf16.mxu0 0
        %1586 = vmatmul.mubr.bf16.gmra.mxu0 %v1324
        %v1587 = vpop.f32.mrf.mxu0
        %v1588 = vadd.f32 %v1359, %v1587
        %v1589 = vpop.f32.mrf.mxu0
        %v1590 = vpop.f32.mrf.mxu0
        %v1591 = vadd.f32 %v1359, %v1590
        %v1592 = vpop.f32.mrf.mxu0
        %1593 = vmatprep.mubr.bf16.mxu0 0
        %1594 = vmatmul.mubr.bf16.gmra.mxu0 %v1325
        %v1595 = vpop.f32.mrf.mxu0
        %v1596 = vadd.f32 %v1359, %v1595
        %v1597 = vpop.f32.mrf.mxu0
        %v1598 = vpop.f32.mrf.mxu0
        %v1599 = vadd.f32 %v1359, %v1598
        %v1600 = vpop.f32.mrf.mxu0
        %1601 = vmatprep.mubr.bf16.mxu0 0
        %1602 = vmatmul.mubr.bf16.gmra.mxu0 %v1326
        %v1603 = vpop.f32.mrf.mxu0
        %v1604 = vadd.f32 %v1359, %v1603
        %v1605 = vpop.f32.mrf.mxu0
        %v1606 = vpop.f32.mrf.mxu0
        %v1607 = vadd.f32 %v1359, %v1606
        %v1608 = vpop.f32.mrf.mxu0
        %1609 = vmatprep.mubr.bf16.mxu0 0
        %1610 = vmatmul.mubr.bf16.gmra.mxu0 %v1327
        %v1611 = vpop.f32.mrf.mxu0
        %v1612 = vadd.f32 %v1359, %v1611
        %v1613 = vpop.f32.mrf.mxu0
        %v1614 = vpop.f32.mrf.mxu0
        %v1615 = vadd.f32 %v1359, %v1614
        %v1616 = vpop.f32.mrf.mxu0
        %1617 = vmatprep.mubr.bf16.mxu0 0
        %1618 = vmatmul.mubr.bf16.gmra.mxu0 %v1328
        %v1619 = vpop.f32.mrf.mxu0
        %v1620 = vadd.f32 %v1359, %v1619
        %v1621 = vpop.f32.mrf.mxu0
        %v1622 = vpop.f32.mrf.mxu0
        %v1623 = vadd.f32 %v1359, %v1622
        %v1624 = vpop.f32.mrf.mxu0
        %1625 = vmatprep.mubr.bf16.mxu0 0
        %1626 = vmatmul.mubr.bf16.gmra.mxu0 %v1329
        %v1627 = vpop.f32.mrf.mxu0
        %v1628 = vadd.f32 %v1359, %v1627
        %v1629 = vpop.f32.mrf.mxu0
        %v1630 = vpop.f32.mrf.mxu0
        %v1631 = vadd.f32 %v1359, %v1630
        %v1632 = vpop.f32.mrf.mxu0
        %1633 = vmatprep.mubr.bf16.mxu0 0
        %1634 = vmatmul.mubr.bf16.gmra.mxu0 %v1330
        %v1635 = vpop.f32.mrf.mxu0
        %v1636 = vadd.f32 %v1359, %v1635
        %v1637 = vpop.f32.mrf.mxu0
        %v1638 = vpop.f32.mrf.mxu0
        %v1639 = vadd.f32 %v1359, %v1638
        %v1640 = vpop.f32.mrf.mxu0
        %1641 = vmatprep.mubr.bf16.mxu0 0
        %1642 = vmatmul.mubr.bf16.gmra.mxu0 %v1331
        %v1643 = vpop.f32.mrf.mxu0
        %v1644 = vadd.f32 %v1359, %v1643
        %v1645 = vpop.f32.mrf.mxu0
        %v1646 = vpop.f32.mrf.mxu0
        %v1647 = vadd.f32 %v1359, %v1646
        %v1648 = vpop.f32.mrf.mxu0
        %1649 = vmatprep.mubr.bf16.mxu0 0
        %1650 = vmatmul.mubr.bf16.gmra.mxu0 %v1332
        %v1651 = vpop.f32.mrf.mxu0
        %v1652 = vadd.f32 %v1359, %v1651
        %v1653 = vpop.f32.mrf.mxu0
        %v1654 = vpop.f32.mrf.mxu0
        %v1655 = vadd.f32 %v1359, %v1654
        %v1656 = vpop.f32.mrf.mxu0
        %1657 = vmatprep.mubr.bf16.mxu0 0
        %1658 = vmatmul.mubr.bf16.gmra.mxu0 %v1333
        %v1659 = vpop.f32.mrf.mxu0
        %v1660 = vadd.f32 %v1359, %v1659
        %v1661 = vpop.f32.mrf.mxu0
        %v1662 = vpop.f32.mrf.mxu0
        %v1663 = vadd.f32 %v1359, %v1662
        %v1664 = vpop.f32.mrf.mxu0
        %1665 = vmatprep.mubr.bf16.mxu0 0
        %1666 = vmatmul.mubr.bf16.gmra.mxu0 %v1334
        %v1667 = vpop.f32.mrf.mxu0
        %v1668 = vadd.f32 %v1359, %v1667
        %v1669 = vpop.f32.mrf.mxu0
        %v1670 = vpop.f32.mrf.mxu0
        %v1671 = vadd.f32 %v1359, %v1670
        %v1672 = vpop.f32.mrf.mxu0
        %1673 = vmatprep.mubr.bf16.mxu0 0
        %1674 = vmatmul.mubr.bf16.gmra.mxu0 %v1335
        %v1675 = vpop.f32.mrf.mxu0
        %v1676 = vadd.f32 %v1359, %v1675
        %v1677 = vpop.f32.mrf.mxu0
        %v1678 = vpop.f32.mrf.mxu0
        %v1679 = vadd.f32 %v1359, %v1678
        %v1680 = vpop.f32.mrf.mxu0
        %1681 = vmatprep.mubr.bf16.mxu0 0
        %1682 = vmatmul.mubr.bf16.gmra.mxu0 %v1336
        %v1683 = vpop.f32.mrf.mxu0
        %v1684 = vadd.f32 %v1359, %v1683
        %v1685 = vpop.f32.mrf.mxu0
        %v1686 = vpop.f32.mrf.mxu0
        %v1687 = vadd.f32 %v1359, %v1686
        %v1688 = vpop.f32.mrf.mxu0
        %1689 = vmatprep.mubr.bf16.mxu0 0
        %1690 = vmatmul.mubr.bf16.gmra.mxu0 %v1337
        %v1691 = vpop.f32.mrf.mxu0
        %v1692 = vadd.f32 %v1359, %v1691
        %v1693 = vpop.f32.mrf.mxu0
        %v1694 = vpop.f32.mrf.mxu0
        %v1695 = vadd.f32 %v1359, %v1694
        %v1696 = vpop.f32.mrf.mxu0
        %1697 = vdwg.mxu0
        %1698 = vst [vmem:[%s272] sm:$0xff] %v1444
        %1699 = vst [vmem:[%s272 + $0x8] sm:$0xff] %v1447
        %1700 = vst [vmem:[%s272 + $0x10] sm:$0xff] %v1452
        %1701 = vst [vmem:[%s272 + $0x18] sm:$0xff] %v1455
        %1702 = vst [vmem:[%s272 + $0x20] sm:$0xff] %v1460
        %1703 = vst [vmem:[%s272 + $0x28] sm:$0xff] %v1463
        %1704 = vst [vmem:[%s272 + $0x30] sm:$0xff] %v1468
        %1705 = vst [vmem:[%s272 + $0x38] sm:$0xff] %v1471
        %1706 = vst [vmem:[%s272 + $0x40] sm:$0xff] %v1476
        %1707 = vst [vmem:[%s272 + $0x48] sm:$0xff] %v1479
        %1708 = vst [vmem:[%s272 + $0x50] sm:$0xff] %v1484
        %1709 = vst [vmem:[%s272 + $0x58] sm:$0xff] %v1487
        %1710 = vst [vmem:[%s272 + $0x60] sm:$0xff] %v1492
        %1711 = vst [vmem:[%s272 + $0x68] sm:$0xff] %v1495
        %1712 = vst [vmem:[%s272 + $0x70] sm:$0xff] %v1500
        %1713 = vst [vmem:[%s272 + $0x78] sm:$0xff] %v1503
        %1714 = vst [vmem:[%s272 + $0x80] sm:$0xff] %v1508
        %1715 = vst [vmem:[%s272 + $0x88] sm:$0xff] %v1511
        %1716 = vst [vmem:[%s272 + $0x90] sm:$0xff] %v1516
        %1717 = vst [vmem:[%s272 + $0x98] sm:$0xff] %v1519
        %1718 = vst [vmem:[%s272 + $0xa0] sm:$0xff] %v1524
        %1719 = vst [vmem:[%s272 + $0xa8] sm:$0xff] %v1527
        %1720 = vst [vmem:[%s272 + $0xb0] sm:$0xff] %v1532
        %1721 = vst [vmem:[%s272 + $0xb8] sm:$0xff] %v1535
        %1722 = vst [vmem:[%s272 + $0xc0] sm:$0xff] %v1540
        %1723 = vst [vmem:[%s272 + $0xc8] sm:$0xff] %v1543
        %1724 = vst [vmem:[%s272 + $0xd0] sm:$0xff] %v1548
        %1725 = vst [vmem:[%s272 + $0xd8] sm:$0xff] %v1551
        %1726 = vst [vmem:[%s272 + $0xe0] sm:$0xff] %v1556
        %1727 = vst [vmem:[%s272 + $0xe8] sm:$0xff] %v1559
        %1728 = vst [vmem:[%s272 + $0xf0] sm:$0xff] %v1564
        %1729 = vst [vmem:[%s272 + $0xf8] sm:$0xff] %v1567
        %1730 = vst [vmem:[%s272 + $0x100] sm:$0xff] %v1572
        %1731 = vst [vmem:[%s272 + $0x108] sm:$0xff] %v1575
        %1732 = vst [vmem:[%s272 + $0x110] sm:$0xff] %v1580
        %1733 = vst [vmem:[%s272 + $0x118] sm:$0xff] %v1583
        %1734 = vst [vmem:[%s272 + $0x120] sm:$0xff] %v1588
        %1735 = vst [vmem:[%s272 + $0x128] sm:$0xff] %v1591
        %1736 = vst [vmem:[%s272 + $0x130] sm:$0xff] %v1596
        %1737 = vst [vmem:[%s272 + $0x138] sm:$0xff] %v1599
        %1738 = vst [vmem:[%s272 + $0x140] sm:$0xff] %v1604
        %1739 = vst [vmem:[%s272 + $0x148] sm:$0xff] %v1607
        %1740 = vst [vmem:[%s272 + $0x150] sm:$0xff] %v1612
        %1741 = vst [vmem:[%s272 + $0x158] sm:$0xff] %v1615
        %1742 = vst [vmem:[%s272 + $0x160] sm:$0xff] %v1620
        %1743 = vst [vmem:[%s272 + $0x168] sm:$0xff] %v1623
        %1744 = vst [vmem:[%s272 + $0x170] sm:$0xff] %v1628
        %1745 = vst [vmem:[%s272 + $0x178] sm:$0xff] %v1631
        %1746 = vst [vmem:[%s272 + $0x180] sm:$0xff] %v1636
        %1747 = vst [vmem:[%s272 + $0x188] sm:$0xff] %v1639
        %1748 = vst [vmem:[%s272 + $0x190] sm:$0xff] %v1644
        %1749 = vst [vmem:[%s272 + $0x198] sm:$0xff] %v1647
        %1750 = vst [vmem:[%s272 + $0x1a0] sm:$0xff] %v1652
        %1751 = vst [vmem:[%s272 + $0x1a8] sm:$0xff] %v1655
        %1752 = vst [vmem:[%s272 + $0x1b0] sm:$0xff] %v1660
        %1753 = vst [vmem:[%s272 + $0x1b8] sm:$0xff] %v1663
        %1754 = vst [vmem:[%s272 + $0x1c0] sm:$0xff] %v1668
        %1755 = vst [vmem:[%s272 + $0x1c8] sm:$0xff] %v1671
        %1756 = vst [vmem:[%s272 + $0x1d0] sm:$0xff] %v1676
        %1757 = vst [vmem:[%s272 + $0x1d8] sm:$0xff] %v1679
        %1758 = vst [vmem:[%s272 + $0x1e0] sm:$0xff] %v1684
        %1759 = vst [vmem:[%s272 + $0x1e8] sm:$0xff] %v1687
        %1760 = vst [vmem:[%s272 + $0x1f0] sm:$0xff] %v1692
        %1761 = vst [vmem:[%s272 + $0x1f8] sm:$0xff] %v1695
        %s1762 = sand.u32 %s181, 1
        %s1763 = scalar_lea.sflag [#allocation3], %s1762
        %s1764 = sand.u32 %s181, 1
        %s1765 = smul.addr %s1764, 512
        %s1766 = scalar_lea.vmem [#allocation2], %s1765
        // Predicated region
        $region49: #{tpu_custom_call.1} parent=47 // pred_check
          %p1767 = pneg %p191
        $region50: #{tpu_custom_call.1} parent=47 // pred_check_branch
          %1769 = sbr.rel (%p1767) target = $region52
        $region51: #{tpu_custom_call.1} parent=47 // pred_region
          %s1770 = smul.u32 64, %s21
          %s1772 = ssub.s32 8192, 8192
          %1773 = vsyncadd %s1763, %s1772
          %s1774 = smul.addr %s1770, 128
          %s1775 = scalar_lea.hbm %s7, %s1774
          %s1776 = sshll.u32 %s1766, 4
          %s1777 = int_to_ptr.vmem [resolvable:$true] %s1776
          %1782 = dma.vmem_to_hbm [thread:$0]  %s1777, 8192, %s1775, %s1763, 128, 128, 8
        $region52: #{tpu_custom_call.1} parent=47 // pred_fallthru
          _
      $region48: #{tpu_custom_call.1} parent=5 // pred_fallthru
        _
      %p1783 = scmp.le.s32.totalorder 2, %s16
      // Predicated region
      $region53: #{tpu_custom_call.1} parent=5 // pred_check
        %p1784 = pneg %p1783
      $region54: #{tpu_custom_call.1} parent=5 // pred_check_branch
        %1786 = sbr.rel (%p1784) target = $region56
      $region55: #{tpu_custom_call.1} parent=5 // pred_region
        %s1787 = ssub.s32 %s16, 2
        // Predicated region
        $region57: #{tpu_custom_call.1} parent=55 // pred_check
          %p1788 = pneg %p197
        $region58: #{tpu_custom_call.1} parent=55 // pred_check_branch
          %1790 = sbr.rel (%p1788) target = $region60
        $region59: #{tpu_custom_call.1} parent=55 // pred_region
          %s1791 = sand.u32 %s182, 1
          %s1792 = scalar_lea.sflag [#allocation3], %s1791
          %s1793 = sand.u32 %s182, 1
          %s1794 = smul.addr %s1793, 512
          %s1795 = scalar_lea.vmem [#allocation2], %s1794
          %1796 = dma.done %s1792, 8192
        $region60: #{tpu_custom_call.1} parent=55 // pred_fallthru
          _
      $region56: #{tpu_custom_call.1} parent=5 // pred_fallthru
        _
    $region6: #{tpu_custom_call.1} parent=1 // loop_footer
      %s20 = sadd.s32 1, %s16
    $region7: #{tpu_custom_call.1} parent=1 // loop_footer_branch
      %15 = sbr.rel target = $region3
    $region8: #{tpu_custom_call.1} parent=1 // loop_exit
      _
    %1797 = vsyncpa [#allocation3], 1
    %s1798 = scalar_lea.sflag [#allocation3], 1
    %1799 = vsyncpa %s1798, 1

</llo_original>
